<compile_context>
chip_gen: v6e
topology: v6e:2x2x1
jax: 0.10.0
libtpu: 0.0.40
codegen_flags: <defaults>
</compile_context>

<pallas_src>
import functools
import math

import jax
import jax.numpy as jnp
from jax.experimental import pallas as pl
from jax.experimental.pallas import tpu as pltpu


def _round_up(v, m):
    return ((v + m - 1) // m) * m


# ----------------------------------------------------------------------------
# Shared math for "everything after the big K=D matmul".  Pure jnp, so the
# bf16-mirrored reference can call exactly the same code.
# ----------------------------------------------------------------------------
def _head_math(big, aux, w2, b2, w4, b4, m, t, *, hp, inv_a):
    """big: [tm, 2*hp+128] f32 = x @ W_aug.  Returns [tm, ANp] f32."""
    f32, bf16 = jnp.float32, jnp.bfloat16

    # Rank-1 factorized-noise corrections: corr = x @ eps_in  (columns 2*hp, 2*hp+1)
    corr_a = big[:, 2 * hp:2 * hp + 1]                       # [tm, 1]
    corr_v = big[:, 2 * hp + 1:2 * hp + 2]                   # [tm, 1]

    # aux rows: 0: sig1*eout1, 1: sig3*eout3, 2: b1_eff, 3: b3_eff  (all f32)
    h_a = big[:, :hp] + corr_a * aux[0:1, :] + aux[2:3, :]
    h_a = jnp.maximum(h_a, 0.0).astype(bf16)                 # [tm, Hp]
    h_v = big[:, hp:2 * hp] + corr_v * aux[1:2, :] + aux[3:4, :]
    h_v = jnp.maximum(h_v, 0.0).astype(bf16)                 # [tm, Hp]

    # Second-stage linears (noise pre-folded on the host; adv_bias folded into b2).
    adv = jnp.dot(h_a, w2, preferred_element_type=f32) + b2  # [tm, ANp]
    val = jnp.dot(h_v, w4, preferred_element_type=f32) + b4  # [tm, N]

    # Dueling combine:  out = adv + (val - mean_a adv) broadcast over actions.
    # M is a bf16 0/1 matrix; the 1/A scale stays in f32 on the VPU.
    adv_mean = jnp.dot(adv.astype(bf16), m, preferred_element_type=f32) * inv_a   # [tm, N]
    delta = (val - adv_mean).astype(bf16)                                          # [tm, N]
    return adv + jnp.dot(delta, t, preferred_element_type=f32)                     # [tm, ANp]


# ----------------------------------------------------------------------------
# Pallas kernels.
# ----------------------------------------------------------------------------
def _dueling_head_kernel(x_ref, waug_ref, aux_ref, w2_ref, b2_ref, w4_ref, b4_ref,
                         m_ref, t_ref, o_ref, *, hp, inv_a):
    """Gridless single-shot kernel (small batches)."""
    x = x_ref[...].astype(jnp.bfloat16)                      # in-kernel f32->bf16 cast
    big = jnp.dot(x, waug_ref[...], preferred_element_type=jnp.float32)
    o_ref[...] = _head_math(big, aux_ref[...], w2_ref[...], b2_ref[...],
                            w4_ref[...], b4_ref[...], m_ref[...], t_ref[...],
                            hp=hp, inv_a=inv_a).astype(o_ref.dtype)


def _dueling_head_kernel_ktiled(x_ref, waug_ref, aux_ref, w2_ref, b2_ref, w4_ref, b4_ref,
                                m_ref, t_ref, o_ref, acc_ref, *, hp, inv_a):
    """Batched kernel: grid = (B tiles, K tiles over D); acc_ref is an f32 scratch."""
    k = pl.program_id(1)

    @pl.when(k == 0)
    def _():
        acc_ref[...] = jnp.zeros_like(acc_ref)

    x = x_ref[...].astype(jnp.bfloat16)
    acc_ref[...] += jnp.dot(x, waug_ref[...], preferred_element_type=jnp.float32)

    @pl.when(k == pl.num_programs(1) - 1)
    def _():
        o_ref[...] = _head_math(acc_ref[...], aux_ref[...], w2_ref[...], b2_ref[...],
                                w4_ref[...], b4_ref[...], m_ref[...], t_ref[...],
                                hp=hp, inv_a=inv_a).astype(o_ref.dtype)


# ----------------------------------------------------------------------------
# Wrapper: forward pass of the module.
# ----------------------------------------------------------------------------
def dueling_head_forward(x, params, *, output_size, n_atoms, block_b=256, block_k=1024):
    """x: [B, C, H, W] (or [B, D]) f32  ->  [B, output_size, n_atoms] f32.

    scale_grad() only rescales gradients, so the forward pass is identity on x.
    """
    B = x.shape[0]
    x_flat = x.reshape(B, -1)                       # flatten(-3,-1); keep f32, cast in-kernel
    if x_flat.dtype != jnp.float32:
        x_flat = x_flat.astype(jnp.float32)
    D = x_flat.shape[1]
    Hp = params["hp"]
    Waug = params["waug"].shape[1]
    ANp = params["w2"].shape[1]
    N = n_atoms
    AN = output_size * n_atoms

    weight_args = (params["waug"], params["aux"], params["w2"], params["b2"],
                   params["w4"], params["b4"], params["M"], params["T"])

    flops = 2 * B * (D * Waug + Hp * ANp + Hp * N + ANp * N + N * ANp)
    bytes_accessed = (x_flat.size * 4
                      + 2 * (params["waug"].size + params["w2"].size + params["w4"].size
                             + params["M"].size + params["T"].size)
                      + 4 * (params["aux"].size + params["b2"].size + params["b4"].size)
                      + B * ANp * 4)
    cost = pl.CostEstimate(flops=int(flops), transcendentals=0,
                           bytes_accessed=int(bytes_accessed))

    if B <= block_b:
        # Small-batch path: single invocation, no grid (avoids grid-step overhead);
        # operands are whole-array VMEM blocks.
        kern = functools.partial(_dueling_head_kernel, hp=Hp, inv_a=params["inv_a"])
        out2d = pl.pallas_call(
            kern,
            out_shape=jax.ShapeDtypeStruct((B, ANp), jnp.float32),
            compiler_params=pltpu.CompilerParams(vmem_limit_bytes=32 * 1024 * 1024),
            cost_estimate=cost,
        )(x_flat, *weight_args)
        return out2d[:, :AN].reshape(B, output_size, n_atoms)

    # ---- Batched path ---------------------------------------------------------
    # Pad B up to a block_b multiple so the fixed-shape MXU tile path is kept even
    # for ragged batch sizes (padded rows are sliced off below).
    Bp = _round_up(B, block_b)
    if Bp != B:
        x_flat = jnp.pad(x_flat, ((0, Bp - B), (0, 0)))
    nb = Bp // block_b

    # K-reduction tile over D (bf16 lanes); fall back to the whole D if it doesn't
    # divide cleanly (still uses the accumulator kernel with a single K step).
    if block_k is not None and block_k % 128 == 0 and D % block_k == 0:
        tk = block_k
    else:
        tk = D
    nk = D // tk

    kern = functools.partial(_dueling_head_kernel_ktiled, hp=Hp, inv_a=params["inv_a"])
    _c = lambda i, k: (0, 0)

    def resident(shape):
        # Constant block index -> single-buffered residency (halves weight VMEM).
        return pl.BlockSpec(shape, _c, pipeline_mode=pl.Buffered(1))

    vmem_est = (2 * block_b * tk * 4                      # x tiles (f32, double-buffered)
                + 2 * tk * Waug * 2                       # W_aug tiles (bf16, double-buffered)
                + (Hp * ANp + Hp * N + ANp * N + N * ANp) * 2   # resident bf16 weights
                + (4 * Hp + ANp + N) * 4                  # resident f32 aux/biases
                + 2 * block_b * ANp * 4                   # output tiles
                + block_b * Waug * 4)                     # accumulator scratch
    vmem_limit = int(min(max(2 * vmem_est, 32 * 1024 * 1024), 64 * 1024 * 1024))

    out2d = pl.pallas_call(
        kern,
        out_shape=jax.ShapeDtypeStruct((Bp, ANp), jnp.float32),
        grid=(nb, nk),                                    # reduction axis (K over D) last
        in_specs=[
            pl.BlockSpec((block_b, tk), lambda i, k: (i, k)),   # x tile
            pl.BlockSpec((tk, Waug),   lambda i, k: (k, 0)),    # augmented D->(2H+2) weight
            resident((4, Hp)),                                  # [sig1*eout1; sig3*eout3; b1; b3]
            resident((Hp, ANp)), resident((1, ANp)),            # w2, b2 (+advantage_bias)
            resident((Hp, N)),   resident((1, N)),              # w4, b4
            resident((ANp, N)),  resident((N, ANp)),            # M (mean), T (broadcast)
        ],
        out_specs=pl.BlockSpec((block_b, ANp), lambda i, k: (i, 0)),
        scratch_shapes=[pltpu.VMEM((block_b, Waug), jnp.float32)],
        compiler_params=pltpu.CompilerParams(
            # Megacore sharding only pays off once there are enough batch tiles.
            dimension_semantics=("parallel" if nb >= 8 else "arbitrary", "arbitrary"),
            vmem_limit_bytes=vmem_limit),
        cost_estimate=cost,
    )(x_flat, *weight_args)
    return out2d[:B, :AN].reshape(B, output_size, n_atoms)


# ----------------------------------------------------------------------------
# Parameter construction (host-side glue, runs once per noise sample).
# ----------------------------------------------------------------------------
def _scale_noise(x):
    # NoisyLinear factorized-noise transform f(x) = sign(x) * sqrt(|x|)
    return jnp.sign(x) * jnp.sqrt(jnp.abs(x))


def _noisy_linear_init(key, in_features, out_features, std_init, noisy):
    kw, kb, ki, ko = jax.random.split(key, 4)
    bound = 1.0 / math.sqrt(in_features)
    w_mu = jax.random.uniform(kw, (out_features, in_features), jnp.float32, -bound, bound)
    b_mu = jax.random.uniform(kb, (out_features,), jnp.float32, -bound, bound)
    if noisy:
        eps_in = _scale_noise(jax.random.normal(ki, (in_features,), jnp.float32))
        eps_out = _scale_noise(jax.random.normal(ko, (out_features,), jnp.float32))
    else:
        eps_in = jnp.zeros((in_features,), jnp.float32)
        eps_out = jnp.zeros((out_features,), jnp.float32)
    return dict(
        w_mu_t=w_mu.T,                               # [in, out] so the kernel does x @ W
        b_mu=b_mu,
        w_sigma=std_init / math.sqrt(in_features),   # weight_sigma fill value (scalar)
        b_sigma=std_init / math.sqrt(out_features),  # bias_sigma fill value (scalar)
        eps_in=eps_in,
        eps_out=eps_out,
    )


def build_head_params(key, in_features, hidden_size, output_size, n_atoms,
                      *, std_init=0.1, noisy=True):
    D, H, A, N = in_features, hidden_size, output_size, n_atoms
    Hp = _round_up(H, 128)                 # lane-align hidden width for in-kernel slicing
    AN = A * N
    ANp = _round_up(AN, 128)               # lane-pad output width
    Waug = 2 * Hp + 128                    # [w1_mu | w3_mu | ein1 | ein3 | zeros]

    k1, k2, k3, k4, kb = jax.random.split(key, 5)
    l1 = _noisy_linear_init(k1, D, H, std_init, noisy)      # adv hidden   (D -> H)
    l2 = _noisy_linear_init(k2, H, AN, std_init, noisy)     # adv out      (H -> A*N)
    l3 = _noisy_linear_init(k3, D, H, std_init, noisy)      # value hidden (D -> H)
    l4 = _noisy_linear_init(k4, H, N, std_init, noisy)      # value out    (H -> N)
    # Learnable per-atom advantage bias (zeros at torch init; randomized here to
    # exercise the path — it cancels exactly in the dueling forward anyway).
    adv_bias = 0.01 * jax.random.normal(kb, (N,), jnp.float32)

    def eff_bias(l):
        return l["b_mu"] + l["b_sigma"] * l["eps_out"]

    def eff_w(l):
        return l["w_mu_t"] + l["w_sigma"] * jnp.outer(l["eps_in"], l["eps_out"])

    # Augmented K=D operand: one MXU pass produces both hidden pre-activations and
    # both rank-1 noise corrections (x @ eps_in). Only bf16 mu weights hit HBM.
    waug = jnp.zeros((D, Waug), jnp.float32)
    waug = waug.at[:, :H].set(l1["w_mu_t"])
    waug = waug.at[:, Hp:Hp + H].set(l3["w_mu_t"])
    waug = waug.at[:, 2 * Hp].set(l1["eps_in"])
    waug = waug.at[:, 2 * Hp + 1].set(l3["eps_in"])

    # Aux rows (f32): sigma*eps_out for each branch + effective biases.
    aux = jnp.zeros((4, Hp), jnp.float32)
    aux = aux.at[0, :H].set(l1["w_sigma"] * l1["eps_out"])
    aux = aux.at[1, :H].set(l3["w_sigma"] * l3["eps_out"])
    aux = aux.at[2, :H].set(eff_bias(l1))
    aux = aux.at[3, :H].set(eff_bias(l3))

    # Small second-stage weights: fold noise here (negligible HBM), cast to bf16,
    # pad hidden rows to Hp and advantage width to ANp; advantage_bias folds into b2.
    w2 = jnp.zeros((Hp, ANp), jnp.float32).at[:H, :AN].set(eff_w(l2))
    b2 = jnp.zeros((1, ANp), jnp.float32).at[0, :AN].set(eff_bias(l2) + jnp.tile(adv_bias, A))
    w4 = jnp.zeros((Hp, N), jnp.float32).at[:H, :].set(eff_w(l4))
    b4 = eff_bias(l4)[None, :]

    # Dueling combine constants (exact 0/1, stored bf16; 1/A scale applied in f32):
    #   M[a*N+n, n'] = [n==n']   -> adv @ M = per-atom sum over actions
    #   T[n', a*N+n] = [n'==n]   -> delta @ T replicates over actions
    eye_n = jnp.eye(N, dtype=jnp.float32)
    m = jnp.zeros((ANp, N), jnp.float32).at[:AN, :].set(jnp.tile(eye_n, (A, 1)))
    t = jnp.zeros((N, ANp), jnp.float32).at[:, :AN].set(jnp.tile(eye_n, (1, A)))

    params = dict(
        waug=waug.astype(jnp.bfloat16),
        aux=aux,
        w2=w2.astype(jnp.bfloat16),
        b2=b2,
        w4=w4.astype(jnp.bfloat16),
        b4=b4,
        M=m.astype(jnp.bfloat16),
        T=t.astype(jnp.bfloat16),
        hp=Hp,
        inv_a=1.0 / A,
    )
    raw = dict(l1=l1, l2=l2, l3=l3, l4=l4, adv_bias=adv_bias)
    return params, raw


# ----------------------------------------------------------------------------
# References.
# ----------------------------------------------------------------------------
def reference_forward_bf16(x_flat, p, *, output_size, n_atoms):
    """Pure-JAX reference using exactly the same bf16 quantization as the kernel."""
    big = jnp.dot(x_flat.astype(jnp.bfloat16), p["waug"],
                  preferred_element_type=jnp.float32)
    out = _head_math(big, p["aux"], p["w2"], p["b2"], p["w4"], p["b4"], p["M"], p["T"],
                     hp=p["hp"], inv_a=p["inv_a"])
    AN = output_size * n_atoms
    return out[:, :AN].reshape(-1, output_size, n_atoms)


def reference_forward_f32(x_flat, raw, *, output_size, n_atoms):
    """Full-precision, literal transcription of the PyTorch module's forward."""
    hi = jax.lax.Precision.HIGHEST

    def noisy_linear(x, layer):
        w = layer["w_mu_t"] + layer["w_sigma"] * jnp.outer(layer["eps_in"], layer["eps_out"])
        b = layer["b_mu"] + layer["b_sigma"] * layer["eps_out"]
        return jnp.dot(x, w, precision=hi) + b

    h_a = jax.nn.relu(noisy_linear(x_flat, raw["l1"]))
    adv = noisy_linear(h_a, raw["l2"]).reshape(-1, output_size, n_atoms) + raw["adv_bias"]
    h_v = jax.nn.relu(noisy_linear(x_flat, raw["l3"]))
    val = noisy_linear(h_v, raw["l4"]).reshape(-1, 1, n_atoms)
    return val + adv - jnp.mean(adv, axis=1, keepdims=True)


# ----------------------------------------------------------------------------
# Main
# ----------------------------------------------------------------------------
if __name__ == "__main__":
    key = jax.random.PRNGKey(0)

    # Small but shape-consistent config (lane-friendly choices):
    input_channels, height, width = 4, 16, 16     # pixels = 256, D = 1024
    hidden_size = 128
    output_size, n_atoms = 4, 32                  # A*N = 128 (lane-dense output)
    std_init, noisy = 0.1, True

    D = input_channels * height * width
    k_params, k_x, k_x2 = jax.random.split(key, 3)
    params, raw = build_head_params(k_params, D, hidden_size, output_size, n_atoms,
                                    std_init=std_init, noisy=noisy)

    # --- small batch (B=2): gridless single-shot kernel -------------------------
    B = 2
    x = jax.random.normal(k_x, (B, input_channels, height, width), jnp.float32)
    out = dueling_head_forward(x, params, output_size=output_size, n_atoms=n_atoms)
    out = jax.block_until_ready(out)
    assert out.shape == (B, output_size, n_atoms)

    x_flat = x.reshape(B, -1)
    ref_bf = reference_forward_bf16(x_flat, params, output_size=output_size, n_atoms=n_atoms)
    assert jnp.allclose(out, ref_bf, atol=1e-2, rtol=1e-2), "mismatch vs bf16-mirrored reference"
    ref_f32 = reference_forward_f32(x_flat, raw, output_size=output_size, n_atoms=n_atoms)
    assert jnp.allclose(out, ref_f32, atol=1e-1, rtol=1e-1), "mismatch vs f32 module-math reference"

    # --- batched path (B=200): exercises B padding (200 -> 256), a 2-step
    #     K-reduction over D (tk=512), and resident single-buffered weights.
    B2 = 200
    x2 = jax.random.normal(k_x2, (B2, input_channels, height, width), jnp.float32)
    out2 = dueling_head_forward(x2, params, output_size=output_size, n_atoms=n_atoms,
                                block_b=128, block_k=512)
    out2 = jax.block_until_ready(out2)
    assert out2.shape == (B2, output_size, n_atoms)
    ref2 = reference_forward_bf16(x2.reshape(B2, -1), params,
                                  output_size=output_size, n_atoms=n_atoms)
    assert jnp.allclose(out2, ref2, atol=1e-2, rtol=1e-2), "batched path mismatch"

    print("KERNEL_OK")
</pallas_src>

<mosaic_0001>
module attributes {stable_mosaic.version = 11 : i64} {
  func.func @_dueling_head_kernel(%arg0: memref<2x1024xf32, #tpu.memory_space<vmem>>, %arg1: memref<1024x384xbf16, #tpu.memory_space<vmem>>, %arg2: memref<4x128xf32, #tpu.memory_space<vmem>>, %arg3: memref<128x128xbf16, #tpu.memory_space<vmem>>, %arg4: memref<1x128xf32, #tpu.memory_space<vmem>>, %arg5: memref<128x32xbf16, #tpu.memory_space<vmem>>, %arg6: memref<1x32xf32, #tpu.memory_space<vmem>>, %arg7: memref<128x32xbf16, #tpu.memory_space<vmem>>, %arg8: memref<32x128xbf16, #tpu.memory_space<vmem>>, %arg9: memref<2x128xf32, #tpu.memory_space<vmem>>) attributes {dimension_semantics = [], scalar_prefetch = 0 : i64, scratch_operands = 0 : i64, tpu.core_type = #tpu.core_type<tc>} {
    %c0 = arith.constant 0 : index
    %c0_0 = arith.constant 0 : index
    %0 = vector.load %arg0[%c0, %c0_0] : memref<2x1024xf32, #tpu.memory_space<vmem>>, vector<2x1024xf32>
    %1 = arith.truncf %0 : vector<2x1024xf32> to vector<2x1024xbf16>
    %c0_1 = arith.constant 0 : index
    %c0_2 = arith.constant 0 : index
    %2 = vector.load %arg1[%c0_1, %c0_2] : memref<1024x384xbf16, #tpu.memory_space<vmem>>, vector<1024x384xbf16>
    %cst = arith.constant dense<0.000000e+00> : vector<2x384xf32>
    %3 = tpu.matmul %1, %2, %cst {dimension_numbers = #tpu.dot_dimension_numbers<[1], [0], [0], [1], [0, 0, 1, 1], [], []>} : vector<2x1024xbf16>, vector<1024x384xbf16>, vector<2x384xf32> -> vector<2x384xf32>
    %c0_3 = arith.constant 0 : index
    %c0_4 = arith.constant 0 : index
    %4 = vector.load %arg2[%c0_3, %c0_4] : memref<4x128xf32, #tpu.memory_space<vmem>>, vector<4x128xf32>
    %c0_5 = arith.constant 0 : index
    %c0_6 = arith.constant 0 : index
    %5 = vector.load %arg3[%c0_5, %c0_6] : memref<128x128xbf16, #tpu.memory_space<vmem>>, vector<128x128xbf16>
    %c0_7 = arith.constant 0 : index
    %c0_8 = arith.constant 0 : index
    %6 = vector.load %arg4[%c0_7, %c0_8] : memref<1x128xf32, #tpu.memory_space<vmem>>, vector<1x128xf32>
    %c0_9 = arith.constant 0 : index
    %c0_10 = arith.constant 0 : index
    %7 = vector.load %arg5[%c0_9, %c0_10] : memref<128x32xbf16, #tpu.memory_space<vmem>>, vector<128x32xbf16>
    %c0_11 = arith.constant 0 : index
    %c0_12 = arith.constant 0 : index
    %8 = vector.load %arg6[%c0_11, %c0_12] : memref<1x32xf32, #tpu.memory_space<vmem>>, vector<1x32xf32>
    %c0_13 = arith.constant 0 : index
    %c0_14 = arith.constant 0 : index
    %9 = vector.load %arg7[%c0_13, %c0_14] : memref<128x32xbf16, #tpu.memory_space<vmem>>, vector<128x32xbf16>
    %c0_15 = arith.constant 0 : index
    %c0_16 = arith.constant 0 : index
    %10 = vector.load %arg8[%c0_15, %c0_16] : memref<32x128xbf16, #tpu.memory_space<vmem>>, vector<32x128xbf16>
    %11 = vector.extract_strided_slice %3 {offsets = [0, 256], sizes = [2, 1], strides = [1, 1]} : vector<2x384xf32> to vector<2x1xf32>
    %12 = vector.extract_strided_slice %3 {offsets = [0, 257], sizes = [2, 1], strides = [1, 1]} : vector<2x384xf32> to vector<2x1xf32>
    %13 = vector.extract_strided_slice %3 {offsets = [0, 0], sizes = [2, 128], strides = [1, 1]} : vector<2x384xf32> to vector<2x128xf32>
    %14 = vector.extract_strided_slice %4 {offsets = [0, 0], sizes = [1, 128], strides = [1, 1]} : vector<4x128xf32> to vector<1x128xf32>
    %15 = vector.broadcast %11 : vector<2x1xf32> to vector<2x128xf32>
    %16 = vector.broadcast %14 : vector<1x128xf32> to vector<2x128xf32>
    %17 = arith.mulf %15, %16 : vector<2x128xf32>
    %18 = arith.addf %13, %17 : vector<2x128xf32>
    %19 = vector.extract_strided_slice %4 {offsets = [2, 0], sizes = [1, 128], strides = [1, 1]} : vector<4x128xf32> to vector<1x128xf32>
    %20 = vector.broadcast %19 : vector<1x128xf32> to vector<2x128xf32>
    %21 = arith.addf %18, %20 : vector<2x128xf32>
    %cst_17 = arith.constant 0.000000e+00 : f32
    %22 = vector.broadcast %cst_17 : f32 to vector<2x128xf32>
    %23 = arith.maximumf %21, %22 : vector<2x128xf32>
    %24 = arith.truncf %23 : vector<2x128xf32> to vector<2x128xbf16>
    %25 = vector.extract_strided_slice %3 {offsets = [0, 128], sizes = [2, 128], strides = [1, 1]} : vector<2x384xf32> to vector<2x128xf32>
    %26 = vector.extract_strided_slice %4 {offsets = [1, 0], sizes = [1, 128], strides = [1, 1]} : vector<4x128xf32> to vector<1x128xf32>
    %27 = vector.broadcast %12 : vector<2x1xf32> to vector<2x128xf32>
    %28 = vector.broadcast %26 : vector<1x128xf32> to vector<2x128xf32>
    %29 = arith.mulf %27, %28 : vector<2x128xf32>
    %30 = arith.addf %25, %29 : vector<2x128xf32>
    %31 = vector.extract_strided_slice %4 {offsets = [3, 0], sizes = [1, 128], strides = [1, 1]} : vector<4x128xf32> to vector<1x128xf32>
    %32 = vector.broadcast %31 : vector<1x128xf32> to vector<2x128xf32>
    %33 = arith.addf %30, %32 : vector<2x128xf32>
    %cst_18 = arith.constant 0.000000e+00 : f32
    %34 = vector.broadcast %cst_18 : f32 to vector<2x128xf32>
    %35 = arith.maximumf %33, %34 : vector<2x128xf32>
    %36 = arith.truncf %35 : vector<2x128xf32> to vector<2x128xbf16>
    %cst_19 = arith.constant dense<0.000000e+00> : vector<2x128xf32>
    %37 = tpu.matmul %24, %5, %cst_19 {dimension_numbers = #tpu.dot_dimension_numbers<[1], [0], [0], [1], [0, 0, 1, 1], [], []>} : vector<2x128xbf16>, vector<128x128xbf16>, vector<2x128xf32> -> vector<2x128xf32>
    %38 = vector.broadcast %6 : vector<1x128xf32> to vector<2x128xf32>
    %39 = arith.addf %37, %38 : vector<2x128xf32>
    %cst_20 = arith.constant dense<0.000000e+00> : vector<2x32xf32>
    %40 = tpu.matmul %36, %7, %cst_20 {dimension_numbers = #tpu.dot_dimension_numbers<[1], [0], [0], [1], [0, 0, 1, 1], [], []>} : vector<2x128xbf16>, vector<128x32xbf16>, vector<2x32xf32> -> vector<2x32xf32>
    %41 = vector.broadcast %8 : vector<1x32xf32> to vector<2x32xf32>
    %42 = arith.addf %40, %41 : vector<2x32xf32>
    %43 = arith.truncf %39 : vector<2x128xf32> to vector<2x128xbf16>
    %cst_21 = arith.constant dense<0.000000e+00> : vector<2x32xf32>
    %44 = tpu.matmul %43, %9, %cst_21 {dimension_numbers = #tpu.dot_dimension_numbers<[1], [0], [0], [1], [0, 0, 1, 1], [], []>} : vector<2x128xbf16>, vector<128x32xbf16>, vector<2x32xf32> -> vector<2x32xf32>
    %cst_22 = arith.constant 2.500000e-01 : f32
    %45 = vector.broadcast %cst_22 : f32 to vector<2x32xf32>
    %46 = arith.mulf %44, %45 : vector<2x32xf32>
    %47 = arith.subf %42, %46 : vector<2x32xf32>
    %48 = arith.truncf %47 : vector<2x32xf32> to vector<2x32xbf16>
    %cst_23 = arith.constant dense<0.000000e+00> : vector<2x128xf32>
    %49 = tpu.matmul %48, %10, %cst_23 {dimension_numbers = #tpu.dot_dimension_numbers<[1], [0], [0], [1], [0, 0, 1, 1], [], []>} : vector<2x32xbf16>, vector<32x128xbf16>, vector<2x128xf32> -> vector<2x128xf32>
    %50 = arith.addf %39, %49 : vector<2x128xf32>
    %c0_24 = arith.constant 0 : index
    %c0_25 = arith.constant 0 : index
    %51 = vector.load %arg9[%c0_24, %c0_25] : memref<2x128xf32, #tpu.memory_space<vmem>>, vector<2x128xf32>
    tpu.vector_store %arg9[%c0_24, %c0_25], %50 {strides = array<i32>} : memref<2x128xf32, #tpu.memory_space<vmem>>, vector<2x128xf32>,
    return
  }
}

</mosaic_0001>

<llo_original>
// kernel: tpu_custom_call.1
$region0: #{tpu_custom_call.1}
  #allocation0 [shape = 'u32[]', space=smem, size = 0x4, offset = 0x4, fixed_abs, tag = 'smem constant byte address 0x4 - core index']
  #allocation1 [shape = 'u32[144,128]{1,0:T(1,128)}', space=vmem, size = 0x12000, scoped, tag = 'internal scratch']
  %s0 = inlined_call_operand.vmem [shape: f32[2,1024], index: 0, kind: input, shape index: {}]
  %s1 = inlined_call_operand.hbm [shape: bf16[1024,384], index: 1, kind: input, shape index: {}]
  %s2 = inlined_call_operand.vmem [shape: f32[4,128], index: 2, kind: input, shape index: {}]
  %s3 = inlined_call_operand.vmem [shape: bf16[128,128], index: 3, kind: input, shape index: {}]
  %s4 = inlined_call_operand.vmem [shape: f32[1,128], index: 4, kind: input, shape index: {}]
  %s5 = inlined_call_operand.vmem [shape: bf16[128,32], index: 5, kind: input, shape index: {}]
  %s6 = inlined_call_operand.vmem [shape: f32[1,32], index: 6, kind: input, shape index: {}]
  %s7 = inlined_call_operand.vmem [shape: bf16[128,32], index: 7, kind: input, shape index: {}]
  %s8 = inlined_call_operand.vmem [shape: bf16[32,128], index: 8, kind: input, shape index: {}]
  %s9 = inlined_call_operand.hbm [shape: f32[2,128], index: 9, kind: output, shape index: {}]
  %s10 = sld [smem:[#allocation0]]
  $region50: #{tpu_custom_call.1} parent=0
    _
  %s12 = ssub.s32 1, %s10
  %s13 = scalar_select 0, %s12, %s10
  $region1: #{tpu_custom_call.1} parent=0
    #allocation2 [shape = 'u8[786432]{0}', space=vmem, size = 0xc0000, scoped, tag = 'input window, operand 1, single buffered']
    #allocation3 [shape = 's32[1]{0}', space=sflag, size = 0x4, scoped, tag = 'scoped memory for tpu_custom_call.1']
    #allocation4 [shape = 's32[1]{0}', space=sflag, size = 0x4, scoped, tag = 'scoped memory for tpu_custom_call.1']
    #allocation5 [shape = 'u8[1024]{0}', space=vmem, size = 0x400, scoped, tag = 'output window, operand 0, single buffered']
    %14 = vsyncpa [#allocation3], 0
    %15 = vsyncpa [#allocation4], 0
    // Predicated region
    $region2: #{tpu_custom_call.1} parent=1 // pred_check
      _
    $region3: #{tpu_custom_call.1} parent=1 // pred_check_branch
      %17 = sbr.rel (0) target = $region5
    $region4: #{tpu_custom_call.1} parent=1 // pred_region
      _
    $region5: #{tpu_custom_call.1} parent=1 // pred_fallthru
      _
    // Predicated region
    $region6: #{tpu_custom_call.1} parent=1 // pred_check
      _
    $region7: #{tpu_custom_call.1} parent=1 // pred_check_branch
      %19 = sbr.rel (0) target = $region9
    $region8: #{tpu_custom_call.1} parent=1 // pred_region
      %s21 = ssub.s32 24576, 24576
      %22 = vsyncadd [#allocation3], %s21
      %s23 = sshll.u32 [#allocation2], 4
      %s24 = int_to_ptr.vmem [resolvable:$true] %s23
      %29 = dma.hbm_to_vmem [thread:$0]  %s1, 24576, %s24, [#allocation3], 192, 192, 12
    $region9: #{tpu_custom_call.1} parent=1 // pred_fallthru
      _
    // Predicated region
    $region10: #{tpu_custom_call.1} parent=1 // pred_check
      _
    $region11: #{tpu_custom_call.1} parent=1 // pred_check_branch
      %31 = sbr.rel (0) target = $region13
    $region12: #{tpu_custom_call.1} parent=1 // pred_region
      _
    $region13: #{tpu_custom_call.1} parent=1 // pred_fallthru
      _
    // Predicated region
    $region14: #{tpu_custom_call.1} parent=1 // pred_check
      _
    $region15: #{tpu_custom_call.1} parent=1 // pred_check_branch
      %33 = sbr.rel (0) target = $region17
    $region16: #{tpu_custom_call.1} parent=1 // pred_region
      _
    $region17: #{tpu_custom_call.1} parent=1 // pred_fallthru
      _
    // Predicated region
    $region18: #{tpu_custom_call.1} parent=1 // pred_check
      _
    $region19: #{tpu_custom_call.1} parent=1 // pred_check_branch
      %35 = sbr.rel (0) target = $region21
    $region20: #{tpu_custom_call.1} parent=1 // pred_region
      _
    $region21: #{tpu_custom_call.1} parent=1 // pred_fallthru
      _
    // Predicated region
    $region22: #{tpu_custom_call.1} parent=1 // pred_check
      _
    $region23: #{tpu_custom_call.1} parent=1 // pred_check_branch
      %37 = sbr.rel (0) target = $region25
    $region24: #{tpu_custom_call.1} parent=1 // pred_region
      _
    $region25: #{tpu_custom_call.1} parent=1 // pred_fallthru
      _
    // Predicated region
    $region26: #{tpu_custom_call.1} parent=1 // pred_check
      _
    $region27: #{tpu_custom_call.1} parent=1 // pred_check_branch
      %39 = sbr.rel (0) target = $region29
    $region28: #{tpu_custom_call.1} parent=1 // pred_region
      _
    $region29: #{tpu_custom_call.1} parent=1 // pred_fallthru
      _
    // Predicated region
    $region30: #{tpu_custom_call.1} parent=1 // pred_check
      _
    $region31: #{tpu_custom_call.1} parent=1 // pred_check_branch
      %41 = sbr.rel (0) target = $region33
    $region32: #{tpu_custom_call.1} parent=1 // pred_region
      _
    $region33: #{tpu_custom_call.1} parent=1 // pred_fallthru
      _
    // Predicated region
    $region34: #{tpu_custom_call.1} parent=1 // pred_check
      _
    $region35: #{tpu_custom_call.1} parent=1 // pred_check_branch
      %43 = sbr.rel (0) target = $region37
    $region36: #{tpu_custom_call.1} parent=1 // pred_region
      _
    $region37: #{tpu_custom_call.1} parent=1 // pred_fallthru
      _
    // Predicated region
    $region38: #{tpu_custom_call.1} parent=1 // pred_check
      _
    $region39: #{tpu_custom_call.1} parent=1 // pred_check_branch
      %45 = sbr.rel (0) target = $region41
    $region40: #{tpu_custom_call.1} parent=1 // pred_region
      %46 = dma.done [#allocation3], 24576
    $region41: #{tpu_custom_call.1} parent=1 // pred_fallthru
      _
    %v48 = vld [vmem:[%s0] sm:$0xff]
    %v49 = vld [vmem:[%s0 + $0x8] sm:$0xff]
    %v52 = vcombine.high %v48, %v48
    %v54 = vunpack.c.l.s4 1983009808
    %v55 = vunpack.c.0.s8 %v54
    %v56 = vlaneseq
    %v57 = vshrl.u32 %v56, 7
    %v58 = vsub.s32 %v55, %v57
    %v59 = vrot.slane %v48, %v58
    %v61 = vunpack.c.l.s4 1983009808
    %v62 = vunpack.c.0.s8 %v61
    %v63 = vlaneseq
    %v64 = vshrl.u32 %v63, 7
    %v65 = vsub.s32 %v62, %v64
    %v66 = vrot.slane %v52, %v65
    %v67 = vcombine.high %v59, %v59
    %v68 = vcombine.high %v66, %v66
    %v69 = vcombine.high %v49, %v49
    %v71 = vunpack.c.l.s4 1983009808
    %v72 = vunpack.c.0.s8 %v71
    %v73 = vlaneseq
    %v74 = vshrl.u32 %v73, 7
    %v75 = vsub.s32 %v72, %v74
    %v76 = vrot.slane %v49, %v75
    %v78 = vunpack.c.l.s4 1983009808
    %v79 = vunpack.c.0.s8 %v78
    %v80 = vlaneseq
    %v81 = vshrl.u32 %v80, 7
    %v82 = vsub.s32 %v79, %v81
    %v83 = vrot.slane %v69, %v82
    %v84 = vcombine.high %v76, %v76
    %v85 = vcombine.high %v83, %v83
    %v94 = vpack.c.bf16 %v59, %v59
    %v95 = vpack.c.bf16 %v67, %v67
    %v96 = vpack.c.bf16 %v66, %v66
    %v97 = vpack.c.bf16 %v68, %v68
    %v98 = vpack.c.bf16 %v76, %v76
    %v99 = vpack.c.bf16 %v84, %v84
    %v100 = vpack.c.bf16 %v83, %v83
    %v101 = vpack.c.bf16 %v85, %v85
    %v102 = vld [vmem:[#allocation2] sm:$0xff]
    %v103 = vld [vmem:[#allocation2 + $0x8] sm:$0xf]
    %v104 = vld [vmem:[#allocation2 + $0xc] sm:$0xff]
    %v105 = vld [vmem:[#allocation2 + $0x14] sm:$0xf]
    %v106 = vld [vmem:[#allocation2 + $0x18] sm:$0xff]
    %v107 = vld [vmem:[#allocation2 + $0x20] sm:$0xf]
    %v108 = vld [vmem:[#allocation2 + $0x24] sm:$0xff]
    %v109 = vld [vmem:[#allocation2 + $0x2c] sm:$0xf]
    %v110 = vld [vmem:[#allocation2 + $0x30] sm:$0xff]
    %v111 = vld [vmem:[#allocation2 + $0x38] sm:$0xf]
    %v112 = vld [vmem:[#allocation2 + $0x3c] sm:$0xff]
    %v113 = vld [vmem:[#allocation2 + $0x44] sm:$0xf]
    %v114 = vld [vmem:[#allocation2 + $0x48] sm:$0xff]
    %v115 = vld [vmem:[#allocation2 + $0x50] sm:$0xf]
    %v116 = vld [vmem:[#allocation2 + $0x54] sm:$0xff]
    %v117 = vld [vmem:[#allocation2 + $0x5c] sm:$0xf]
    %v118 = vld [vmem:[#allocation2 + $0x60] sm:$0xff]
    %v119 = vld [vmem:[#allocation2 + $0x68] sm:$0xf]
    %v120 = vld [vmem:[#allocation2 + $0x6c] sm:$0xff]
    %v121 = vld [vmem:[#allocation2 + $0x74] sm:$0xf]
    %v122 = vld [vmem:[#allocation2 + $0x78] sm:$0xff]
    %v123 = vld [vmem:[#allocation2 + $0x80] sm:$0xf]
    %v124 = vld [vmem:[#allocation2 + $0x84] sm:$0xff]
    %v125 = vld [vmem:[#allocation2 + $0x8c] sm:$0xf]
    %v126 = vld [vmem:[#allocation2 + $0x90] sm:$0xff]
    %v127 = vld [vmem:[#allocation2 + $0x98] sm:$0xf]
    %v128 = vld [vmem:[#allocation2 + $0x9c] sm:$0xff]
    %v129 = vld [vmem:[#allocation2 + $0xa4] sm:$0xf]
    %v130 = vld [vmem:[#allocation2 + $0xa8] sm:$0xff]
    %v131 = vld [vmem:[#allocation2 + $0xb0] sm:$0xf]
    %v132 = vld [vmem:[#allocation2 + $0xb4] sm:$0xff]
    %v133 = vld [vmem:[#allocation2 + $0xbc] sm:$0xf]
    %v134 = vld [vmem:[#allocation2 + $0xc0] sm:$0xff]
    %v135 = vld [vmem:[#allocation2 + $0xc8] sm:$0xf]
    %v136 = vld [vmem:[#allocation2 + $0xcc] sm:$0xff]
    %v137 = vld [vmem:[#allocation2 + $0xd4] sm:$0xf]
    %v138 = vld [vmem:[#allocation2 + $0xd8] sm:$0xff]
    %v139 = vld [vmem:[#allocation2 + $0xe0] sm:$0xf]
    %v140 = vld [vmem:[#allocation2 + $0xe4] sm:$0xff]
    %v141 = vld [vmem:[#allocation2 + $0xec] sm:$0xf]
    %v142 = vld [vmem:[#allocation2 + $0xf0] sm:$0xff]
    %v143 = vld [vmem:[#allocation2 + $0xf8] sm:$0xf]
    %v144 = vld [vmem:[#allocation2 + $0xfc] sm:$0xff]
    %v145 = vld [vmem:[#allocation2 + $0x104] sm:$0xf]
    %v146 = vld [vmem:[#allocation2 + $0x108] sm:$0xff]
    %v147 = vld [vmem:[#allocation2 + $0x110] sm:$0xf]
    %v148 = vld [vmem:[#allocation2 + $0x114] sm:$0xff]
    %v149 = vld [vmem:[#allocation2 + $0x11c] sm:$0xf]
    %v150 = vld [vmem:[#allocation2 + $0x120] sm:$0xff]
    %v151 = vld [vmem:[#allocation2 + $0x128] sm:$0xf]
    %v152 = vld [vmem:[#allocation2 + $0x12c] sm:$0xff]
    %v153 = vld [vmem:[#allocation2 + $0x134] sm:$0xf]
    %v154 = vld [vmem:[#allocation2 + $0x138] sm:$0xff]
    %v155 = vld [vmem:[#allocation2 + $0x140] sm:$0xf]
    %v156 = vld [vmem:[#allocation2 + $0x144] sm:$0xff]
    %v157 = vld [vmem:[#allocation2 + $0x14c] sm:$0xf]
    %v158 = vld [vmem:[#allocation2 + $0x150] sm:$0xff]
    %v159 = vld [vmem:[#allocation2 + $0x158] sm:$0xf]
    %v160 = vld [vmem:[#allocation2 + $0x15c] sm:$0xff]
    %v161 = vld [vmem:[#allocation2 + $0x164] sm:$0xf]
    %v162 = vld [vmem:[#allocation2 + $0x168] sm:$0xff]
    %v163 = vld [vmem:[#allocation2 + $0x170] sm:$0xf]
    %v164 = vld [vmem:[#allocation2 + $0x174] sm:$0xff]
    %v165 = vld [vmem:[#allocation2 + $0x17c] sm:$0xf]
    %v166 = vld [vmem:[#allocation2 + $0x180] sm:$0xff]
    %v167 = vld [vmem:[#allocation2 + $0x188] sm:$0xf]
    %v168 = vld [vmem:[#allocation2 + $0x18c] sm:$0xff]
    %v169 = vld [vmem:[#allocation2 + $0x194] sm:$0xf]
    %v170 = vld [vmem:[#allocation2 + $0x198] sm:$0xff]
    %v171 = vld [vmem:[#allocation2 + $0x1a0] sm:$0xf]
    %v172 = vld [vmem:[#allocation2 + $0x1a4] sm:$0xff]
    %v173 = vld [vmem:[#allocation2 + $0x1ac] sm:$0xf]
    %v174 = vld [vmem:[#allocation2 + $0x1b0] sm:$0xff]
    %v175 = vld [vmem:[#allocation2 + $0x1b8] sm:$0xf]
    %v176 = vld [vmem:[#allocation2 + $0x1bc] sm:$0xff]
    %v177 = vld [vmem:[#allocation2 + $0x1c4] sm:$0xf]
    %v178 = vld [vmem:[#allocation2 + $0x1c8] sm:$0xff]
    %v179 = vld [vmem:[#allocation2 + $0x1d0] sm:$0xf]
    %v180 = vld [vmem:[#allocation2 + $0x1d4] sm:$0xff]
    %v181 = vld [vmem:[#allocation2 + $0x1dc] sm:$0xf]
    %v182 = vld [vmem:[#allocation2 + $0x1e0] sm:$0xff]
    %v183 = vld [vmem:[#allocation2 + $0x1e8] sm:$0xf]
    %v184 = vld [vmem:[#allocation2 + $0x1ec] sm:$0xff]
    %v185 = vld [vmem:[#allocation2 + $0x1f4] sm:$0xf]
    %v186 = vld [vmem:[#allocation2 + $0x1f8] sm:$0xff]
    %v187 = vld [vmem:[#allocation2 + $0x200] sm:$0xf]
    %v188 = vld [vmem:[#allocation2 + $0x204] sm:$0xff]
    %v189 = vld [vmem:[#allocation2 + $0x20c] sm:$0xf]
    %v190 = vld [vmem:[#allocation2 + $0x210] sm:$0xff]
    %v191 = vld [vmem:[#allocation2 + $0x218] sm:$0xf]
    %v192 = vld [vmem:[#allocation2 + $0x21c] sm:$0xff]
    %v193 = vld [vmem:[#allocation2 + $0x224] sm:$0xf]
    %v194 = vld [vmem:[#allocation2 + $0x228] sm:$0xff]
    %v195 = vld [vmem:[#allocation2 + $0x230] sm:$0xf]
    %v196 = vld [vmem:[#allocation2 + $0x234] sm:$0xff]
    %v197 = vld [vmem:[#allocation2 + $0x23c] sm:$0xf]
    %v198 = vld [vmem:[#allocation2 + $0x240] sm:$0xff]
    %v199 = vld [vmem:[#allocation2 + $0x248] sm:$0xf]
    %v200 = vld [vmem:[#allocation2 + $0x24c] sm:$0xff]
    %v201 = vld [vmem:[#allocation2 + $0x254] sm:$0xf]
    %v202 = vld [vmem:[#allocation2 + $0x258] sm:$0xff]
    %v203 = vld [vmem:[#allocation2 + $0x260] sm:$0xf]
    %v204 = vld [vmem:[#allocation2 + $0x264] sm:$0xff]
    %v205 = vld [vmem:[#allocation2 + $0x26c] sm:$0xf]
    %v206 = vld [vmem:[#allocation2 + $0x270] sm:$0xff]
    %v207 = vld [vmem:[#allocation2 + $0x278] sm:$0xf]
    %v208 = vld [vmem:[#allocation2 + $0x27c] sm:$0xff]
    %v209 = vld [vmem:[#allocation2 + $0x284] sm:$0xf]
    %v210 = vld [vmem:[#allocation2 + $0x288] sm:$0xff]
    %v211 = vld [vmem:[#allocation2 + $0x290] sm:$0xf]
    %v212 = vld [vmem:[#allocation2 + $0x294] sm:$0xff]
    %v213 = vld [vmem:[#allocation2 + $0x29c] sm:$0xf]
    %v214 = vld [vmem:[#allocation2 + $0x2a0] sm:$0xff]
    %v215 = vld [vmem:[#allocation2 + $0x2a8] sm:$0xf]
    %v216 = vld [vmem:[#allocation2 + $0x2ac] sm:$0xff]
    %v217 = vld [vmem:[#allocation2 + $0x2b4] sm:$0xf]
    %v218 = vld [vmem:[#allocation2 + $0x2b8] sm:$0xff]
    %v219 = vld [vmem:[#allocation2 + $0x2c0] sm:$0xf]
    %v220 = vld [vmem:[#allocation2 + $0x2c4] sm:$0xff]
    %v221 = vld [vmem:[#allocation2 + $0x2cc] sm:$0xf]
    %v222 = vld [vmem:[#allocation2 + $0x2d0] sm:$0xff]
    %v223 = vld [vmem:[#allocation2 + $0x2d8] sm:$0xf]
    %v224 = vld [vmem:[#allocation2 + $0x2dc] sm:$0xff]
    %v225 = vld [vmem:[#allocation2 + $0x2e4] sm:$0xf]
    %v226 = vld [vmem:[#allocation2 + $0x2e8] sm:$0xff]
    %v227 = vld [vmem:[#allocation2 + $0x2f0] sm:$0xf]
    %v228 = vld [vmem:[#allocation2 + $0x2f4] sm:$0xff]
    %v229 = vld [vmem:[#allocation2 + $0x2fc] sm:$0xf]
    %v230 = vld [vmem:[#allocation2 + $0x300] sm:$0xff]
    %v231 = vld [vmem:[#allocation2 + $0x308] sm:$0xf]
    %v232 = vld [vmem:[#allocation2 + $0x30c] sm:$0xff]
    %v233 = vld [vmem:[#allocation2 + $0x314] sm:$0xf]
    %v234 = vld [vmem:[#allocation2 + $0x318] sm:$0xff]
    %v235 = vld [vmem:[#allocation2 + $0x320] sm:$0xf]
    %v236 = vld [vmem:[#allocation2 + $0x324] sm:$0xff]
    %v237 = vld [vmem:[#allocation2 + $0x32c] sm:$0xf]
    %v238 = vld [vmem:[#allocation2 + $0x330] sm:$0xff]
    %v239 = vld [vmem:[#allocation2 + $0x338] sm:$0xf]
    %v240 = vld [vmem:[#allocation2 + $0x33c] sm:$0xff]
    %v241 = vld [vmem:[#allocation2 + $0x344] sm:$0xf]
    %v242 = vld [vmem:[#allocation2 + $0x348] sm:$0xff]
    %v243 = vld [vmem:[#allocation2 + $0x350] sm:$0xf]
    %v244 = vld [vmem:[#allocation2 + $0x354] sm:$0xff]
    %v245 = vld [vmem:[#allocation2 + $0x35c] sm:$0xf]
    %v246 = vld [vmem:[#allocation2 + $0x360] sm:$0xff]
    %v247 = vld [vmem:[#allocation2 + $0x368] sm:$0xf]
    %v248 = vld [vmem:[#allocation2 + $0x36c] sm:$0xff]
    %v249 = vld [vmem:[#allocation2 + $0x374] sm:$0xf]
    %v250 = vld [vmem:[#allocation2 + $0x378] sm:$0xff]
    %v251 = vld [vmem:[#allocation2 + $0x380] sm:$0xf]
    %v252 = vld [vmem:[#allocation2 + $0x384] sm:$0xff]
    %v253 = vld [vmem:[#allocation2 + $0x38c] sm:$0xf]
    %v254 = vld [vmem:[#allocation2 + $0x390] sm:$0xff]
    %v255 = vld [vmem:[#allocation2 + $0x398] sm:$0xf]
    %v256 = vld [vmem:[#allocation2 + $0x39c] sm:$0xff]
    %v257 = vld [vmem:[#allocation2 + $0x3a4] sm:$0xf]
    %v258 = vld [vmem:[#allocation2 + $0x3a8] sm:$0xff]
    %v259 = vld [vmem:[#allocation2 + $0x3b0] sm:$0xf]
    %v260 = vld [vmem:[#allocation2 + $0x3b4] sm:$0xff]
    %v261 = vld [vmem:[#allocation2 + $0x3bc] sm:$0xf]
    %v262 = vld [vmem:[#allocation2 + $0x3c0] sm:$0xff]
    %v263 = vld [vmem:[#allocation2 + $0x3c8] sm:$0xf]
    %v264 = vld [vmem:[#allocation2 + $0x3cc] sm:$0xff]
    %v265 = vld [vmem:[#allocation2 + $0x3d4] sm:$0xf]
    %v266 = vld [vmem:[#allocation2 + $0x3d8] sm:$0xff]
    %v267 = vld [vmem:[#allocation2 + $0x3e0] sm:$0xf]
    %v268 = vld [vmem:[#allocation2 + $0x3e4] sm:$0xff]
    %v269 = vld [vmem:[#allocation2 + $0x3ec] sm:$0xf]
    %v270 = vld [vmem:[#allocation2 + $0x3f0] sm:$0xff]
    %v271 = vld [vmem:[#allocation2 + $0x3f8] sm:$0xf]
    %v272 = vld [vmem:[#allocation2 + $0x3fc] sm:$0xff]
    %v273 = vld [vmem:[#allocation2 + $0x404] sm:$0xf]
    %v274 = vld [vmem:[#allocation2 + $0x408] sm:$0xff]
    %v275 = vld [vmem:[#allocation2 + $0x410] sm:$0xf]
    %v276 = vld [vmem:[#allocation2 + $0x414] sm:$0xff]
    %v277 = vld [vmem:[#allocation2 + $0x41c] sm:$0xf]
    %v278 = vld [vmem:[#allocation2 + $0x420] sm:$0xff]
    %v279 = vld [vmem:[#allocation2 + $0x428] sm:$0xf]
    %v280 = vld [vmem:[#allocation2 + $0x42c] sm:$0xff]
    %v281 = vld [vmem:[#allocation2 + $0x434] sm:$0xf]
    %v282 = vld [vmem:[#allocation2 + $0x438] sm:$0xff]
    %v283 = vld [vmem:[#allocation2 + $0x440] sm:$0xf]
    %v284 = vld [vmem:[#allocation2 + $0x444] sm:$0xff]
    %v285 = vld [vmem:[#allocation2 + $0x44c] sm:$0xf]
    %v286 = vld [vmem:[#allocation2 + $0x450] sm:$0xff]
    %v287 = vld [vmem:[#allocation2 + $0x458] sm:$0xf]
    %v288 = vld [vmem:[#allocation2 + $0x45c] sm:$0xff]
    %v289 = vld [vmem:[#allocation2 + $0x464] sm:$0xf]
    %v290 = vld [vmem:[#allocation2 + $0x468] sm:$0xff]
    %v291 = vld [vmem:[#allocation2 + $0x470] sm:$0xf]
    %v292 = vld [vmem:[#allocation2 + $0x474] sm:$0xff]
    %v293 = vld [vmem:[#allocation2 + $0x47c] sm:$0xf]
    %v294 = vld [vmem:[#allocation2 + $0x480] sm:$0xff]
    %v295 = vld [vmem:[#allocation2 + $0x488] sm:$0xf]
    %v296 = vld [vmem:[#allocation2 + $0x48c] sm:$0xff]
    %v297 = vld [vmem:[#allocation2 + $0x494] sm:$0xf]
    %v298 = vld [vmem:[#allocation2 + $0x498] sm:$0xff]
    %v299 = vld [vmem:[#allocation2 + $0x4a0] sm:$0xf]
    %v300 = vld [vmem:[#allocation2 + $0x4a4] sm:$0xff]
    %v301 = vld [vmem:[#allocation2 + $0x4ac] sm:$0xf]
    %v302 = vld [vmem:[#allocation2 + $0x4b0] sm:$0xff]
    %v303 = vld [vmem:[#allocation2 + $0x4b8] sm:$0xf]
    %v304 = vld [vmem:[#allocation2 + $0x4bc] sm:$0xff]
    %v305 = vld [vmem:[#allocation2 + $0x4c4] sm:$0xf]
    %v306 = vld [vmem:[#allocation2 + $0x4c8] sm:$0xff]
    %v307 = vld [vmem:[#allocation2 + $0x4d0] sm:$0xf]
    %v308 = vld [vmem:[#allocation2 + $0x4d4] sm:$0xff]
    %v309 = vld [vmem:[#allocation2 + $0x4dc] sm:$0xf]
    %v310 = vld [vmem:[#allocation2 + $0x4e0] sm:$0xff]
    %v311 = vld [vmem:[#allocation2 + $0x4e8] sm:$0xf]
    %v312 = vld [vmem:[#allocation2 + $0x4ec] sm:$0xff]
    %v313 = vld [vmem:[#allocation2 + $0x4f4] sm:$0xf]
    %v314 = vld [vmem:[#allocation2 + $0x4f8] sm:$0xff]
    %v315 = vld [vmem:[#allocation2 + $0x500] sm:$0xf]
    %v316 = vld [vmem:[#allocation2 + $0x504] sm:$0xff]
    %v317 = vld [vmem:[#allocation2 + $0x50c] sm:$0xf]
    %v318 = vld [vmem:[#allocation2 + $0x510] sm:$0xff]
    %v319 = vld [vmem:[#allocation2 + $0x518] sm:$0xf]
    %v320 = vld [vmem:[#allocation2 + $0x51c] sm:$0xff]
    %v321 = vld [vmem:[#allocation2 + $0x524] sm:$0xf]
    %v322 = vld [vmem:[#allocation2 + $0x528] sm:$0xff]
    %v323 = vld [vmem:[#allocation2 + $0x530] sm:$0xf]
    %v324 = vld [vmem:[#allocation2 + $0x534] sm:$0xff]
    %v325 = vld [vmem:[#allocation2 + $0x53c] sm:$0xf]
    %v326 = vld [vmem:[#allocation2 + $0x540] sm:$0xff]
    %v327 = vld [vmem:[#allocation2 + $0x548] sm:$0xf]
    %v328 = vld [vmem:[#allocation2 + $0x54c] sm:$0xff]
    %v329 = vld [vmem:[#allocation2 + $0x554] sm:$0xf]
    %v330 = vld [vmem:[#allocation2 + $0x558] sm:$0xff]
    %v331 = vld [vmem:[#allocation2 + $0x560] sm:$0xf]
    %v332 = vld [vmem:[#allocation2 + $0x564] sm:$0xff]
    %v333 = vld [vmem:[#allocation2 + $0x56c] sm:$0xf]
    %v334 = vld [vmem:[#allocation2 + $0x570] sm:$0xff]
    %v335 = vld [vmem:[#allocation2 + $0x578] sm:$0xf]
    %v336 = vld [vmem:[#allocation2 + $0x57c] sm:$0xff]
    %v337 = vld [vmem:[#allocation2 + $0x584] sm:$0xf]
    %v338 = vld [vmem:[#allocation2 + $0x588] sm:$0xff]
    %v339 = vld [vmem:[#allocation2 + $0x590] sm:$0xf]
    %v340 = vld [vmem:[#allocation2 + $0x594] sm:$0xff]
    %v341 = vld [vmem:[#allocation2 + $0x59c] sm:$0xf]
    %v342 = vld [vmem:[#allocation2 + $0x5a0] sm:$0xff]
    %v343 = vld [vmem:[#allocation2 + $0x5a8] sm:$0xf]
    %v344 = vld [vmem:[#allocation2 + $0x5ac] sm:$0xff]
    %v345 = vld [vmem:[#allocation2 + $0x5b4] sm:$0xf]
    %v346 = vld [vmem:[#allocation2 + $0x5b8] sm:$0xff]
    %v347 = vld [vmem:[#allocation2 + $0x5c0] sm:$0xf]
    %v348 = vld [vmem:[#allocation2 + $0x5c4] sm:$0xff]
    %v349 = vld [vmem:[#allocation2 + $0x5cc] sm:$0xf]
    %v350 = vld [vmem:[#allocation2 + $0x5d0] sm:$0xff]
    %v351 = vld [vmem:[#allocation2 + $0x5d8] sm:$0xf]
    %v352 = vld [vmem:[#allocation2 + $0x5dc] sm:$0xff]
    %v353 = vld [vmem:[#allocation2 + $0x5e4] sm:$0xf]
    %v354 = vld [vmem:[#allocation2 + $0x5e8] sm:$0xff]
    %v355 = vld [vmem:[#allocation2 + $0x5f0] sm:$0xf]
    %v356 = vld [vmem:[#allocation2 + $0x5f4] sm:$0xff]
    %v357 = vld [vmem:[#allocation2 + $0x5fc] sm:$0xf]
    %v614 = vunpack.c.l.b16 %v102
    %v615 = vunpack.c.h.b16 %v102
    %v616 = vunpack.c.l.b16 %v103
    %v617 = vunpack.c.l.b16 %v104
    %v618 = vunpack.c.h.b16 %v104
    %v619 = vunpack.c.l.b16 %v105
    %v620 = vunpack.c.l.b16 %v106
    %v621 = vunpack.c.h.b16 %v106
    %v622 = vunpack.c.l.b16 %v107
    %v623 = vunpack.c.l.b16 %v108
    %v624 = vunpack.c.h.b16 %v108
    %v625 = vunpack.c.l.b16 %v109
    %v626 = vunpack.c.l.b16 %v110
    %v627 = vunpack.c.h.b16 %v110
    %v628 = vunpack.c.l.b16 %v111
    %v629 = vunpack.c.l.b16 %v112
    %v630 = vunpack.c.h.b16 %v112
    %v631 = vunpack.c.l.b16 %v113
    %v632 = vunpack.c.l.b16 %v114
    %v633 = vunpack.c.h.b16 %v114
    %v634 = vunpack.c.l.b16 %v115
    %v635 = vunpack.c.l.b16 %v116
    %v636 = vunpack.c.h.b16 %v116
    %v637 = vunpack.c.l.b16 %v117
    %v638 = vunpack.c.l.b16 %v118
    %v639 = vunpack.c.h.b16 %v118
    %v640 = vunpack.c.l.b16 %v119
    %v641 = vunpack.c.l.b16 %v120
    %v642 = vunpack.c.h.b16 %v120
    %v643 = vunpack.c.l.b16 %v121
    %v644 = vunpack.c.l.b16 %v122
    %v645 = vunpack.c.h.b16 %v122
    %v646 = vunpack.c.l.b16 %v123
    %v647 = vunpack.c.l.b16 %v124
    %v648 = vunpack.c.h.b16 %v124
    %v649 = vunpack.c.l.b16 %v125
    %v650 = vunpack.c.l.b16 %v126
    %v651 = vunpack.c.h.b16 %v126
    %v652 = vunpack.c.l.b16 %v127
    %v653 = vunpack.c.l.b16 %v128
    %v654 = vunpack.c.h.b16 %v128
    %v655 = vunpack.c.l.b16 %v129
    %v656 = vunpack.c.l.b16 %v130
    %v657 = vunpack.c.h.b16 %v130
    %v658 = vunpack.c.l.b16 %v131
    %v659 = vunpack.c.l.b16 %v132
    %v660 = vunpack.c.h.b16 %v132
    %v661 = vunpack.c.l.b16 %v133
    %v662 = vunpack.c.l.b16 %v134
    %v663 = vunpack.c.h.b16 %v134
    %v664 = vunpack.c.l.b16 %v135
    %v665 = vunpack.c.l.b16 %v136
    %v666 = vunpack.c.h.b16 %v136
    %v667 = vunpack.c.l.b16 %v137
    %v668 = vunpack.c.l.b16 %v138
    %v669 = vunpack.c.h.b16 %v138
    %v670 = vunpack.c.l.b16 %v139
    %v671 = vunpack.c.l.b16 %v140
    %v672 = vunpack.c.h.b16 %v140
    %v673 = vunpack.c.l.b16 %v141
    %v674 = vunpack.c.l.b16 %v142
    %v675 = vunpack.c.h.b16 %v142
    %v676 = vunpack.c.l.b16 %v143
    %v677 = vunpack.c.l.b16 %v144
    %v678 = vunpack.c.h.b16 %v144
    %v679 = vunpack.c.l.b16 %v145
    %v680 = vunpack.c.l.b16 %v146
    %v681 = vunpack.c.h.b16 %v146
    %v682 = vunpack.c.l.b16 %v147
    %v683 = vunpack.c.l.b16 %v148
    %v684 = vunpack.c.h.b16 %v148
    %v685 = vunpack.c.l.b16 %v149
    %v686 = vunpack.c.l.b16 %v150
    %v687 = vunpack.c.h.b16 %v150
    %v688 = vunpack.c.l.b16 %v151
    %v689 = vunpack.c.l.b16 %v152
    %v690 = vunpack.c.h.b16 %v152
    %v691 = vunpack.c.l.b16 %v153
    %v692 = vunpack.c.l.b16 %v154
    %v693 = vunpack.c.h.b16 %v154
    %v694 = vunpack.c.l.b16 %v155
    %v695 = vunpack.c.l.b16 %v156
    %v696 = vunpack.c.h.b16 %v156
    %v697 = vunpack.c.l.b16 %v157
    %v698 = vunpack.c.l.b16 %v158
    %v699 = vunpack.c.h.b16 %v158
    %v700 = vunpack.c.l.b16 %v159
    %v701 = vunpack.c.l.b16 %v160
    %v702 = vunpack.c.h.b16 %v160
    %v703 = vunpack.c.l.b16 %v161
    %v704 = vunpack.c.l.b16 %v162
    %v705 = vunpack.c.h.b16 %v162
    %v706 = vunpack.c.l.b16 %v163
    %v707 = vunpack.c.l.b16 %v164
    %v708 = vunpack.c.h.b16 %v164
    %v709 = vunpack.c.l.b16 %v165
    %v710 = vunpack.c.l.b16 %v166
    %v711 = vunpack.c.h.b16 %v166
    %v712 = vunpack.c.l.b16 %v167
    %v713 = vunpack.c.l.b16 %v168
    %v714 = vunpack.c.h.b16 %v168
    %v715 = vunpack.c.l.b16 %v169
    %v716 = vunpack.c.l.b16 %v170
    %v717 = vunpack.c.h.b16 %v170
    %v718 = vunpack.c.l.b16 %v171
    %v719 = vunpack.c.l.b16 %v172
    %v720 = vunpack.c.h.b16 %v172
    %v721 = vunpack.c.l.b16 %v173
    %v722 = vunpack.c.l.b16 %v174
    %v723 = vunpack.c.h.b16 %v174
    %v724 = vunpack.c.l.b16 %v175
    %v725 = vunpack.c.l.b16 %v176
    %v726 = vunpack.c.h.b16 %v176
    %v727 = vunpack.c.l.b16 %v177
    %v728 = vunpack.c.l.b16 %v178
    %v729 = vunpack.c.h.b16 %v178
    %v730 = vunpack.c.l.b16 %v179
    %v731 = vunpack.c.l.b16 %v180
    %v732 = vunpack.c.h.b16 %v180
    %v733 = vunpack.c.l.b16 %v181
    %v734 = vunpack.c.l.b16 %v182
    %v735 = vunpack.c.h.b16 %v182
    %v736 = vunpack.c.l.b16 %v183
    %v737 = vunpack.c.l.b16 %v184
    %v738 = vunpack.c.h.b16 %v184
    %v739 = vunpack.c.l.b16 %v185
    %v740 = vunpack.c.l.b16 %v186
    %v741 = vunpack.c.h.b16 %v186
    %v742 = vunpack.c.l.b16 %v187
    %v743 = vunpack.c.l.b16 %v188
    %v744 = vunpack.c.h.b16 %v188
    %v745 = vunpack.c.l.b16 %v189
    %v746 = vunpack.c.l.b16 %v190
    %v747 = vunpack.c.h.b16 %v190
    %v748 = vunpack.c.l.b16 %v191
    %v749 = vunpack.c.l.b16 %v192
    %v750 = vunpack.c.h.b16 %v192
    %v751 = vunpack.c.l.b16 %v193
    %v752 = vunpack.c.l.b16 %v194
    %v753 = vunpack.c.h.b16 %v194
    %v754 = vunpack.c.l.b16 %v195
    %v755 = vunpack.c.l.b16 %v196
    %v756 = vunpack.c.h.b16 %v196
    %v757 = vunpack.c.l.b16 %v197
    %v758 = vunpack.c.l.b16 %v198
    %v759 = vunpack.c.h.b16 %v198
    %v760 = vunpack.c.l.b16 %v199
    %v761 = vunpack.c.l.b16 %v200
    %v762 = vunpack.c.h.b16 %v200
    %v763 = vunpack.c.l.b16 %v201
    %v764 = vunpack.c.l.b16 %v202
    %v765 = vunpack.c.h.b16 %v202
    %v766 = vunpack.c.l.b16 %v203
    %v767 = vunpack.c.l.b16 %v204
    %v768 = vunpack.c.h.b16 %v204
    %v769 = vunpack.c.l.b16 %v205
    %v770 = vunpack.c.l.b16 %v206
    %v771 = vunpack.c.h.b16 %v206
    %v772 = vunpack.c.l.b16 %v207
    %v773 = vunpack.c.l.b16 %v208
    %v774 = vunpack.c.h.b16 %v208
    %v775 = vunpack.c.l.b16 %v209
    %v776 = vunpack.c.l.b16 %v210
    %v777 = vunpack.c.h.b16 %v210
    %v778 = vunpack.c.l.b16 %v211
    %v779 = vunpack.c.l.b16 %v212
    %v780 = vunpack.c.h.b16 %v212
    %v781 = vunpack.c.l.b16 %v213
    %v782 = vunpack.c.l.b16 %v214
    %v783 = vunpack.c.h.b16 %v214
    %v784 = vunpack.c.l.b16 %v215
    %v785 = vunpack.c.l.b16 %v216
    %v786 = vunpack.c.h.b16 %v216
    %v787 = vunpack.c.l.b16 %v217
    %v788 = vunpack.c.l.b16 %v218
    %v789 = vunpack.c.h.b16 %v218
    %v790 = vunpack.c.l.b16 %v219
    %v791 = vunpack.c.l.b16 %v220
    %v792 = vunpack.c.h.b16 %v220
    %v793 = vunpack.c.l.b16 %v221
    %v794 = vunpack.c.l.b16 %v222
    %v795 = vunpack.c.h.b16 %v222
    %v796 = vunpack.c.l.b16 %v223
    %v797 = vunpack.c.l.b16 %v224
    %v798 = vunpack.c.h.b16 %v224
    %v799 = vunpack.c.l.b16 %v225
    %v800 = vunpack.c.l.b16 %v226
    %v801 = vunpack.c.h.b16 %v226
    %v802 = vunpack.c.l.b16 %v227
    %v803 = vunpack.c.l.b16 %v228
    %v804 = vunpack.c.h.b16 %v228
    %v805 = vunpack.c.l.b16 %v229
    %v806 = vunpack.c.l.b16 %v230
    %v807 = vunpack.c.h.b16 %v230
    %v808 = vunpack.c.l.b16 %v231
    %v809 = vunpack.c.l.b16 %v232
    %v810 = vunpack.c.h.b16 %v232
    %v811 = vunpack.c.l.b16 %v233
    %v812 = vunpack.c.l.b16 %v234
    %v813 = vunpack.c.h.b16 %v234
    %v814 = vunpack.c.l.b16 %v235
    %v815 = vunpack.c.l.b16 %v236
    %v816 = vunpack.c.h.b16 %v236
    %v817 = vunpack.c.l.b16 %v237
    %v818 = vunpack.c.l.b16 %v238
    %v819 = vunpack.c.h.b16 %v238
    %v820 = vunpack.c.l.b16 %v239
    %v821 = vunpack.c.l.b16 %v240
    %v822 = vunpack.c.h.b16 %v240
    %v823 = vunpack.c.l.b16 %v241
    %v824 = vunpack.c.l.b16 %v242
    %v825 = vunpack.c.h.b16 %v242
    %v826 = vunpack.c.l.b16 %v243
    %v827 = vunpack.c.l.b16 %v244
    %v828 = vunpack.c.h.b16 %v244
    %v829 = vunpack.c.l.b16 %v245
    %v830 = vunpack.c.l.b16 %v246
    %v831 = vunpack.c.h.b16 %v246
    %v832 = vunpack.c.l.b16 %v247
    %v833 = vunpack.c.l.b16 %v248
    %v834 = vunpack.c.h.b16 %v248
    %v835 = vunpack.c.l.b16 %v249
    %v836 = vunpack.c.l.b16 %v250
    %v837 = vunpack.c.h.b16 %v250
    %v838 = vunpack.c.l.b16 %v251
    %v839 = vunpack.c.l.b16 %v252
    %v840 = vunpack.c.h.b16 %v252
    %v841 = vunpack.c.l.b16 %v253
    %v842 = vunpack.c.l.b16 %v254
    %v843 = vunpack.c.h.b16 %v254
    %v844 = vunpack.c.l.b16 %v255
    %v845 = vunpack.c.l.b16 %v256
    %v846 = vunpack.c.h.b16 %v256
    %v847 = vunpack.c.l.b16 %v257
    %v848 = vunpack.c.l.b16 %v258
    %v849 = vunpack.c.h.b16 %v258
    %v850 = vunpack.c.l.b16 %v259
    %v851 = vunpack.c.l.b16 %v260
    %v852 = vunpack.c.h.b16 %v260
    %v853 = vunpack.c.l.b16 %v261
    %v854 = vunpack.c.l.b16 %v262
    %v855 = vunpack.c.h.b16 %v262
    %v856 = vunpack.c.l.b16 %v263
    %v857 = vunpack.c.l.b16 %v264
    %v858 = vunpack.c.h.b16 %v264
    %v859 = vunpack.c.l.b16 %v265
    %v860 = vunpack.c.l.b16 %v266
    %v861 = vunpack.c.h.b16 %v266
    %v862 = vunpack.c.l.b16 %v267
    %v863 = vunpack.c.l.b16 %v268
    %v864 = vunpack.c.h.b16 %v268
    %v865 = vunpack.c.l.b16 %v269
    %v866 = vunpack.c.l.b16 %v270
    %v867 = vunpack.c.h.b16 %v270
    %v868 = vunpack.c.l.b16 %v271
    %v869 = vunpack.c.l.b16 %v272
    %v870 = vunpack.c.h.b16 %v272
    %v871 = vunpack.c.l.b16 %v273
    %v872 = vunpack.c.l.b16 %v274
    %v873 = vunpack.c.h.b16 %v274
    %v874 = vunpack.c.l.b16 %v275
    %v875 = vunpack.c.l.b16 %v276
    %v876 = vunpack.c.h.b16 %v276
    %v877 = vunpack.c.l.b16 %v277
    %v878 = vunpack.c.l.b16 %v278
    %v879 = vunpack.c.h.b16 %v278
    %v880 = vunpack.c.l.b16 %v279
    %v881 = vunpack.c.l.b16 %v280
    %v882 = vunpack.c.h.b16 %v280
    %v883 = vunpack.c.l.b16 %v281
    %v884 = vunpack.c.l.b16 %v282
    %v885 = vunpack.c.h.b16 %v282
    %v886 = vunpack.c.l.b16 %v283
    %v887 = vunpack.c.l.b16 %v284
    %v888 = vunpack.c.h.b16 %v284
    %v889 = vunpack.c.l.b16 %v285
    %v890 = vunpack.c.l.b16 %v286
    %v891 = vunpack.c.h.b16 %v286
    %v892 = vunpack.c.l.b16 %v287
    %v893 = vunpack.c.l.b16 %v288
    %v894 = vunpack.c.h.b16 %v288
    %v895 = vunpack.c.l.b16 %v289
    %v896 = vunpack.c.l.b16 %v290
    %v897 = vunpack.c.h.b16 %v290
    %v898 = vunpack.c.l.b16 %v291
    %v899 = vunpack.c.l.b16 %v292
    %v900 = vunpack.c.h.b16 %v292
    %v901 = vunpack.c.l.b16 %v293
    %v902 = vunpack.c.l.b16 %v294
    %v903 = vunpack.c.h.b16 %v294
    %v904 = vunpack.c.l.b16 %v295
    %v905 = vunpack.c.l.b16 %v296
    %v906 = vunpack.c.h.b16 %v296
    %v907 = vunpack.c.l.b16 %v297
    %v908 = vunpack.c.l.b16 %v298
    %v909 = vunpack.c.h.b16 %v298
    %v910 = vunpack.c.l.b16 %v299
    %v911 = vunpack.c.l.b16 %v300
    %v912 = vunpack.c.h.b16 %v300
    %v913 = vunpack.c.l.b16 %v301
    %v914 = vunpack.c.l.b16 %v302
    %v915 = vunpack.c.h.b16 %v302
    %v916 = vunpack.c.l.b16 %v303
    %v917 = vunpack.c.l.b16 %v304
    %v918 = vunpack.c.h.b16 %v304
    %v919 = vunpack.c.l.b16 %v305
    %v920 = vunpack.c.l.b16 %v306
    %v921 = vunpack.c.h.b16 %v306
    %v922 = vunpack.c.l.b16 %v307
    %v923 = vunpack.c.l.b16 %v308
    %v924 = vunpack.c.h.b16 %v308
    %v925 = vunpack.c.l.b16 %v309
    %v926 = vunpack.c.l.b16 %v310
    %v927 = vunpack.c.h.b16 %v310
    %v928 = vunpack.c.l.b16 %v311
    %v929 = vunpack.c.l.b16 %v312
    %v930 = vunpack.c.h.b16 %v312
    %v931 = vunpack.c.l.b16 %v313
    %v932 = vunpack.c.l.b16 %v314
    %v933 = vunpack.c.h.b16 %v314
    %v934 = vunpack.c.l.b16 %v315
    %v935 = vunpack.c.l.b16 %v316
    %v936 = vunpack.c.h.b16 %v316
    %v937 = vunpack.c.l.b16 %v317
    %v938 = vunpack.c.l.b16 %v318
    %v939 = vunpack.c.h.b16 %v318
    %v940 = vunpack.c.l.b16 %v319
    %v941 = vunpack.c.l.b16 %v320
    %v942 = vunpack.c.h.b16 %v320
    %v943 = vunpack.c.l.b16 %v321
    %v944 = vunpack.c.l.b16 %v322
    %v945 = vunpack.c.h.b16 %v322
    %v946 = vunpack.c.l.b16 %v323
    %v947 = vunpack.c.l.b16 %v324
    %v948 = vunpack.c.h.b16 %v324
    %v949 = vunpack.c.l.b16 %v325
    %v950 = vunpack.c.l.b16 %v326
    %v951 = vunpack.c.h.b16 %v326
    %v952 = vunpack.c.l.b16 %v327
    %v953 = vunpack.c.l.b16 %v328
    %v954 = vunpack.c.h.b16 %v328
    %v955 = vunpack.c.l.b16 %v329
    %v956 = vunpack.c.l.b16 %v330
    %v957 = vunpack.c.h.b16 %v330
    %v958 = vunpack.c.l.b16 %v331
    %v959 = vunpack.c.l.b16 %v332
    %v960 = vunpack.c.h.b16 %v332
    %v961 = vunpack.c.l.b16 %v333
    %v962 = vunpack.c.l.b16 %v334
    %v963 = vunpack.c.h.b16 %v334
    %v964 = vunpack.c.l.b16 %v335
    %v965 = vunpack.c.l.b16 %v336
    %v966 = vunpack.c.h.b16 %v336
    %v967 = vunpack.c.l.b16 %v337
    %v968 = vunpack.c.l.b16 %v338
    %v969 = vunpack.c.h.b16 %v338
    %v970 = vunpack.c.l.b16 %v339
    %v971 = vunpack.c.l.b16 %v340
    %v972 = vunpack.c.h.b16 %v340
    %v973 = vunpack.c.l.b16 %v341
    %v974 = vunpack.c.l.b16 %v342
    %v975 = vunpack.c.h.b16 %v342
    %v976 = vunpack.c.l.b16 %v343
    %v977 = vunpack.c.l.b16 %v344
    %v978 = vunpack.c.h.b16 %v344
    %v979 = vunpack.c.l.b16 %v345
    %v980 = vunpack.c.l.b16 %v346
    %v981 = vunpack.c.h.b16 %v346
    %v982 = vunpack.c.l.b16 %v347
    %v983 = vunpack.c.l.b16 %v348
    %v984 = vunpack.c.h.b16 %v348
    %v985 = vunpack.c.l.b16 %v349
    %v986 = vunpack.c.l.b16 %v350
    %v987 = vunpack.c.h.b16 %v350
    %v988 = vunpack.c.l.b16 %v351
    %v989 = vunpack.c.l.b16 %v352
    %v990 = vunpack.c.h.b16 %v352
    %v991 = vunpack.c.l.b16 %v353
    %v992 = vunpack.c.l.b16 %v354
    %v993 = vunpack.c.h.b16 %v354
    %v994 = vunpack.c.l.b16 %v355
    %v995 = vunpack.c.l.b16 %v356
    %v996 = vunpack.c.h.b16 %v356
    %v997 = vunpack.c.l.b16 %v357
    %v998 = vpack.c.b16 %v617, %v614
    %v999 = vpack.c.b16 %v618, %v615
    %v1000 = vpack.c.b16 %v619, %v616
    %v1001 = vpack.c.b16 %v623, %v620
    %v1002 = vpack.c.b16 %v624, %v621
    %v1003 = vpack.c.b16 %v625, %v622
    %v1004 = vpack.c.b16 %v629, %v626
    %v1005 = vpack.c.b16 %v630, %v627
    %v1006 = vpack.c.b16 %v631, %v628
    %v1007 = vpack.c.b16 %v635, %v632
    %v1008 = vpack.c.b16 %v636, %v633
    %v1009 = vpack.c.b16 %v637, %v634
    %v1010 = vpack.c.b16 %v641, %v638
    %v1011 = vpack.c.b16 %v642, %v639
    %v1012 = vpack.c.b16 %v643, %v640
    %v1013 = vpack.c.b16 %v647, %v644
    %v1014 = vpack.c.b16 %v648, %v645
    %v1015 = vpack.c.b16 %v649, %v646
    %v1016 = vpack.c.b16 %v653, %v650
    %v1017 = vpack.c.b16 %v654, %v651
    %v1018 = vpack.c.b16 %v655, %v652
    %v1019 = vpack.c.b16 %v659, %v656
    %v1020 = vpack.c.b16 %v660, %v657
    %v1021 = vpack.c.b16 %v661, %v658
    %v1022 = vpack.c.b16 %v665, %v662
    %v1023 = vpack.c.b16 %v666, %v663
    %v1024 = vpack.c.b16 %v667, %v664
    %v1025 = vpack.c.b16 %v671, %v668
    %v1026 = vpack.c.b16 %v672, %v669
    %v1027 = vpack.c.b16 %v673, %v670
    %v1028 = vpack.c.b16 %v677, %v674
    %v1029 = vpack.c.b16 %v678, %v675
    %v1030 = vpack.c.b16 %v679, %v676
    %v1031 = vpack.c.b16 %v683, %v680
    %v1032 = vpack.c.b16 %v684, %v681
    %v1033 = vpack.c.b16 %v685, %v682
    %v1034 = vpack.c.b16 %v689, %v686
    %v1035 = vpack.c.b16 %v690, %v687
    %v1036 = vpack.c.b16 %v691, %v688
    %v1037 = vpack.c.b16 %v695, %v692
    %v1038 = vpack.c.b16 %v696, %v693
    %v1039 = vpack.c.b16 %v697, %v694
    %v1040 = vpack.c.b16 %v701, %v698
    %v1041 = vpack.c.b16 %v702, %v699
    %v1042 = vpack.c.b16 %v703, %v700
    %v1043 = vpack.c.b16 %v707, %v704
    %v1044 = vpack.c.b16 %v708, %v705
    %v1045 = vpack.c.b16 %v709, %v706
    %v1046 = vpack.c.b16 %v713, %v710
    %v1047 = vpack.c.b16 %v714, %v711
    %v1048 = vpack.c.b16 %v715, %v712
    %v1049 = vpack.c.b16 %v719, %v716
    %v1050 = vpack.c.b16 %v720, %v717
    %v1051 = vpack.c.b16 %v721, %v718
    %v1052 = vpack.c.b16 %v725, %v722
    %v1053 = vpack.c.b16 %v726, %v723
    %v1054 = vpack.c.b16 %v727, %v724
    %v1055 = vpack.c.b16 %v731, %v728
    %v1056 = vpack.c.b16 %v732, %v729
    %v1057 = vpack.c.b16 %v733, %v730
    %v1058 = vpack.c.b16 %v737, %v734
    %v1059 = vpack.c.b16 %v738, %v735
    %v1060 = vpack.c.b16 %v739, %v736
    %v1061 = vpack.c.b16 %v743, %v740
    %v1062 = vpack.c.b16 %v744, %v741
    %v1063 = vpack.c.b16 %v745, %v742
    %v1064 = vpack.c.b16 %v749, %v746
    %v1065 = vpack.c.b16 %v750, %v747
    %v1066 = vpack.c.b16 %v751, %v748
    %v1067 = vpack.c.b16 %v755, %v752
    %v1068 = vpack.c.b16 %v756, %v753
    %v1069 = vpack.c.b16 %v757, %v754
    %v1070 = vpack.c.b16 %v761, %v758
    %v1071 = vpack.c.b16 %v762, %v759
    %v1072 = vpack.c.b16 %v763, %v760
    %v1073 = vpack.c.b16 %v767, %v764
    %v1074 = vpack.c.b16 %v768, %v765
    %v1075 = vpack.c.b16 %v769, %v766
    %v1076 = vpack.c.b16 %v773, %v770
    %v1077 = vpack.c.b16 %v774, %v771
    %v1078 = vpack.c.b16 %v775, %v772
    %v1079 = vpack.c.b16 %v779, %v776
    %v1080 = vpack.c.b16 %v780, %v777
    %v1081 = vpack.c.b16 %v781, %v778
    %v1082 = vpack.c.b16 %v785, %v782
    %v1083 = vpack.c.b16 %v786, %v783
    %v1084 = vpack.c.b16 %v787, %v784
    %v1085 = vpack.c.b16 %v791, %v788
    %v1086 = vpack.c.b16 %v792, %v789
    %v1087 = vpack.c.b16 %v793, %v790
    %v1088 = vpack.c.b16 %v797, %v794
    %v1089 = vpack.c.b16 %v798, %v795
    %v1090 = vpack.c.b16 %v799, %v796
    %v1091 = vpack.c.b16 %v803, %v800
    %v1092 = vpack.c.b16 %v804, %v801
    %v1093 = vpack.c.b16 %v805, %v802
    %v1094 = vpack.c.b16 %v809, %v806
    %v1095 = vpack.c.b16 %v810, %v807
    %v1096 = vpack.c.b16 %v811, %v808
    %v1097 = vpack.c.b16 %v815, %v812
    %v1098 = vpack.c.b16 %v816, %v813
    %v1099 = vpack.c.b16 %v817, %v814
    %v1100 = vpack.c.b16 %v821, %v818
    %v1101 = vpack.c.b16 %v822, %v819
    %v1102 = vpack.c.b16 %v823, %v820
    %v1103 = vpack.c.b16 %v827, %v824
    %v1104 = vpack.c.b16 %v828, %v825
    %v1105 = vpack.c.b16 %v829, %v826
    %v1106 = vpack.c.b16 %v833, %v830
    %v1107 = vpack.c.b16 %v834, %v831
    %v1108 = vpack.c.b16 %v835, %v832
    %v1109 = vpack.c.b16 %v839, %v836
    %v1110 = vpack.c.b16 %v840, %v837
    %v1111 = vpack.c.b16 %v841, %v838
    %v1112 = vpack.c.b16 %v845, %v842
    %v1113 = vpack.c.b16 %v846, %v843
    %v1114 = vpack.c.b16 %v847, %v844
    %v1115 = vpack.c.b16 %v851, %v848
    %v1116 = vpack.c.b16 %v852, %v849
    %v1117 = vpack.c.b16 %v853, %v850
    %v1118 = vpack.c.b16 %v857, %v854
    %v1119 = vpack.c.b16 %v858, %v855
    %v1120 = vpack.c.b16 %v859, %v856
    %v1121 = vpack.c.b16 %v863, %v860
    %v1122 = vpack.c.b16 %v864, %v861
    %v1123 = vpack.c.b16 %v865, %v862
    %v1124 = vpack.c.b16 %v869, %v866
    %v1125 = vpack.c.b16 %v870, %v867
    %v1126 = vpack.c.b16 %v871, %v868
    %v1127 = vpack.c.b16 %v875, %v872
    %v1128 = vpack.c.b16 %v876, %v873
    %v1129 = vpack.c.b16 %v877, %v874
    %v1130 = vpack.c.b16 %v881, %v878
    %v1131 = vpack.c.b16 %v882, %v879
    %v1132 = vpack.c.b16 %v883, %v880
    %v1133 = vpack.c.b16 %v887, %v884
    %v1134 = vpack.c.b16 %v888, %v885
    %v1135 = vpack.c.b16 %v889, %v886
    %v1136 = vpack.c.b16 %v893, %v890
    %v1137 = vpack.c.b16 %v894, %v891
    %v1138 = vpack.c.b16 %v895, %v892
    %v1139 = vpack.c.b16 %v899, %v896
    %v1140 = vpack.c.b16 %v900, %v897
    %v1141 = vpack.c.b16 %v901, %v898
    %v1142 = vpack.c.b16 %v905, %v902
    %v1143 = vpack.c.b16 %v906, %v903
    %v1144 = vpack.c.b16 %v907, %v904
    %v1145 = vpack.c.b16 %v911, %v908
    %v1146 = vpack.c.b16 %v912, %v909
    %v1147 = vpack.c.b16 %v913, %v910
    %v1148 = vpack.c.b16 %v917, %v914
    %v1149 = vpack.c.b16 %v918, %v915
    %v1150 = vpack.c.b16 %v919, %v916
    %v1151 = vpack.c.b16 %v923, %v920
    %v1152 = vpack.c.b16 %v924, %v921
    %v1153 = vpack.c.b16 %v925, %v922
    %v1154 = vpack.c.b16 %v929, %v926
    %v1155 = vpack.c.b16 %v930, %v927
    %v1156 = vpack.c.b16 %v931, %v928
    %v1157 = vpack.c.b16 %v935, %v932
    %v1158 = vpack.c.b16 %v936, %v933
    %v1159 = vpack.c.b16 %v937, %v934
    %v1160 = vpack.c.b16 %v941, %v938
    %v1161 = vpack.c.b16 %v942, %v939
    %v1162 = vpack.c.b16 %v943, %v940
    %v1163 = vpack.c.b16 %v947, %v944
    %v1164 = vpack.c.b16 %v948, %v945
    %v1165 = vpack.c.b16 %v949, %v946
    %v1166 = vpack.c.b16 %v953, %v950
    %v1167 = vpack.c.b16 %v954, %v951
    %v1168 = vpack.c.b16 %v955, %v952
    %v1169 = vpack.c.b16 %v959, %v956
    %v1170 = vpack.c.b16 %v960, %v957
    %v1171 = vpack.c.b16 %v961, %v958
    %v1172 = vpack.c.b16 %v965, %v962
    %v1173 = vpack.c.b16 %v966, %v963
    %v1174 = vpack.c.b16 %v967, %v964
    %v1175 = vpack.c.b16 %v971, %v968
    %v1176 = vpack.c.b16 %v972, %v969
    %v1177 = vpack.c.b16 %v973, %v970
    %v1178 = vpack.c.b16 %v977, %v974
    %v1179 = vpack.c.b16 %v978, %v975
    %v1180 = vpack.c.b16 %v979, %v976
    %v1181 = vpack.c.b16 %v983, %v980
    %v1182 = vpack.c.b16 %v984, %v981
    %v1183 = vpack.c.b16 %v985, %v982
    %v1184 = vpack.c.b16 %v989, %v986
    %v1185 = vpack.c.b16 %v990, %v987
    %v1186 = vpack.c.b16 %v991, %v988
    %v1187 = vpack.c.b16 %v995, %v992
    %v1188 = vpack.c.b16 %v996, %v993
    %v1189 = vpack.c.b16 %v997, %v994
    %1382 = vmatprep.subr.bf16.mxu0 %v1020
    %1383 = vmatpush1.bf16.msra.mxu0 %v1019
    %1384 = vmatprep.subr.bf16.mxu0 %v1017
    %1385 = vmatpush1.bf16.msra.mxu0 %v1016
    %1386 = vmatprep.subr.bf16.mxu0 %v1014
    %1387 = vmatpush1.bf16.msra.mxu0 %v1013
    %1388 = vmatprep.subr.bf16.mxu0 %v1011
    %1389 = vmatpush1.bf16.msra.mxu0 %v1010
    %1390 = vmatprep.subr.bf16.mxu0 %v1008
    %1391 = vmatpush1.bf16.msra.mxu0 %v1007
    %1392 = vmatprep.subr.bf16.mxu0 %v1005
    %1393 = vmatpush1.bf16.msra.mxu0 %v1004
    %1394 = vmatprep.subr.bf16.mxu0 %v1002
    %1395 = vmatpush1.bf16.msra.mxu0 %v1001
    %1396 = vmatprep.subr.bf16.mxu0 %v999
    %1397 = vmatpush1.bf16.msra.mxu0 %v998
    %1398 = vmatprep.subr.bf16.mxu0 %v1044
    %1399 = vmatpush2.bf16.msra.mxu0 %v1043
    %1400 = vmatprep.subr.bf16.mxu0 %v1041
    %1401 = vmatpush2.bf16.msra.mxu0 %v1040
    %1402 = vmatprep.subr.bf16.mxu0 %v1038
    %1403 = vmatpush2.bf16.msra.mxu0 %v1037
    %1404 = vmatprep.subr.bf16.mxu0 %v1035
    %1405 = vmatpush2.bf16.msra.mxu0 %v1034
    %1406 = vmatprep.subr.bf16.mxu0 %v1032
    %1407 = vmatpush2.bf16.msra.mxu0 %v1031
    %1408 = vmatprep.subr.bf16.mxu0 %v1029
    %1409 = vmatpush2.bf16.msra.mxu0 %v1028
    %1410 = vmatprep.subr.bf16.mxu0 %v1026
    %1411 = vmatpush2.bf16.msra.mxu0 %v1025
    %1412 = vmatprep.subr.bf16.mxu0 %v1023
    %1413 = vmatpush2.bf16.msra.mxu0 %v1022
    %1414 = vmatprep.mubr.bf16.mxu0 %v95
    %1415 = vmatmul.mubr.bf16.gmra.mxu0 %v94
    %v1416 = vpop.f32.mrf.mxu0
    %v1417 = vadd.f32 0.0, %v1416
    %v1418 = vpop.f32.mrf.mxu0
    %v1419 = vadd.f32 0.0, %v1418
    %v1420 = vpop.f32.mrf.mxu0
    %v1421 = vpop.f32.mrf.mxu0
    %1422 = vdwg.mxu0
    %1423 = vmatprep.subr.bf16.mxu0 %v1068
    %1424 = vmatpush1.bf16.msra.mxu0 %v1067
    %1425 = vmatprep.subr.bf16.mxu0 %v1065
    %1426 = vmatpush1.bf16.msra.mxu0 %v1064
    %1427 = vmatprep.subr.bf16.mxu0 %v1062
    %1428 = vmatpush1.bf16.msra.mxu0 %v1061
    %1429 = vmatprep.subr.bf16.mxu0 %v1059
    %1430 = vmatpush1.bf16.msra.mxu0 %v1058
    %1431 = vmatprep.subr.bf16.mxu0 %v1056
    %1432 = vmatpush1.bf16.msra.mxu0 %v1055
    %1433 = vmatprep.subr.bf16.mxu0 %v1053
    %1434 = vmatpush1.bf16.msra.mxu0 %v1052
    %1435 = vmatprep.subr.bf16.mxu0 %v1050
    %1436 = vmatpush1.bf16.msra.mxu0 %v1049
    %1437 = vmatprep.subr.bf16.mxu0 %v1047
    %1438 = vmatpush1.bf16.msra.mxu0 %v1046
    %1439 = vmatprep.subr.bf16.mxu0 %v1092
    %1440 = vmatpush2.bf16.msra.mxu0 %v1091
    %1441 = vmatprep.subr.bf16.mxu0 %v1089
    %1442 = vmatpush2.bf16.msra.mxu0 %v1088
    %1443 = vmatprep.subr.bf16.mxu0 %v1086
    %1444 = vmatpush2.bf16.msra.mxu0 %v1085
    %1445 = vmatprep.subr.bf16.mxu0 %v1083
    %1446 = vmatpush2.bf16.msra.mxu0 %v1082
    %1447 = vmatprep.subr.bf16.mxu0 %v1080
    %1448 = vmatpush2.bf16.msra.mxu0 %v1079
    %1449 = vmatprep.subr.bf16.mxu0 %v1077
    %1450 = vmatpush2.bf16.msra.mxu0 %v1076
    %1451 = vmatprep.subr.bf16.mxu0 %v1074
    %1452 = vmatpush2.bf16.msra.mxu0 %v1073
    %1453 = vmatprep.subr.bf16.mxu0 %v1071
    %1454 = vmatpush2.bf16.msra.mxu0 %v1070
    %1455 = vmatprep.mubr.bf16.mxu0 %v97
    %1456 = vmatmul.mubr.bf16.gmra.mxu0 %v96
    %v1457 = vpop.f32.mrf.mxu0
    %v1458 = vadd.f32 %v1417, %v1457
    %v1459 = vpop.f32.mrf.mxu0
    %v1460 = vadd.f32 %v1419, %v1459
    %v1461 = vpop.f32.mrf.mxu0
    %v1462 = vpop.f32.mrf.mxu0
    %1463 = vdwg.mxu0
    %1464 = vmatprep.subr.bf16.mxu0 %v1116
    %1465 = vmatpush1.bf16.msra.mxu0 %v1115
    %1466 = vmatprep.subr.bf16.mxu0 %v1113
    %1467 = vmatpush1.bf16.msra.mxu0 %v1112
    %1468 = vmatprep.subr.bf16.mxu0 %v1110
    %1469 = vmatpush1.bf16.msra.mxu0 %v1109
    %1470 = vmatprep.subr.bf16.mxu0 %v1107
    %1471 = vmatpush1.bf16.msra.mxu0 %v1106
    %1472 = vmatprep.subr.bf16.mxu0 %v1104
    %1473 = vmatpush1.bf16.msra.mxu0 %v1103
    %1474 = vmatprep.subr.bf16.mxu0 %v1101
    %1475 = vmatpush1.bf16.msra.mxu0 %v1100
    %1476 = vmatprep.subr.bf16.mxu0 %v1098
    %1477 = vmatpush1.bf16.msra.mxu0 %v1097
    %1478 = vmatprep.subr.bf16.mxu0 %v1095
    %1479 = vmatpush1.bf16.msra.mxu0 %v1094
    %1480 = vmatprep.subr.bf16.mxu0 %v1140
    %1481 = vmatpush2.bf16.msra.mxu0 %v1139
    %1482 = vmatprep.subr.bf16.mxu0 %v1137
    %1483 = vmatpush2.bf16.msra.mxu0 %v1136
    %1484 = vmatprep.subr.bf16.mxu0 %v1134
    %1485 = vmatpush2.bf16.msra.mxu0 %v1133
    %1486 = vmatprep.subr.bf16.mxu0 %v1131
    %1487 = vmatpush2.bf16.msra.mxu0 %v1130
    %1488 = vmatprep.subr.bf16.mxu0 %v1128
    %1489 = vmatpush2.bf16.msra.mxu0 %v1127
    %1490 = vmatprep.subr.bf16.mxu0 %v1125
    %1491 = vmatpush2.bf16.msra.mxu0 %v1124
    %1492 = vmatprep.subr.bf16.mxu0 %v1122
    %1493 = vmatpush2.bf16.msra.mxu0 %v1121
    %1494 = vmatprep.subr.bf16.mxu0 %v1119
    %1495 = vmatpush2.bf16.msra.mxu0 %v1118
    %1496 = vmatprep.mubr.bf16.mxu0 %v99
    %1497 = vmatmul.mubr.bf16.gmra.mxu0 %v98
    %v1498 = vpop.f32.mrf.mxu0
    %v1499 = vadd.f32 %v1458, %v1498
    %v1500 = vpop.f32.mrf.mxu0
    %v1501 = vadd.f32 %v1460, %v1500
    %v1502 = vpop.f32.mrf.mxu0
    %v1503 = vpop.f32.mrf.mxu0
    %1504 = vdwg.mxu0
    %1505 = vmatprep.subr.bf16.mxu0 %v1164
    %1506 = vmatpush1.bf16.msra.mxu0 %v1163
    %1507 = vmatprep.subr.bf16.mxu0 %v1161
    %1508 = vmatpush1.bf16.msra.mxu0 %v1160
    %1509 = vmatprep.subr.bf16.mxu0 %v1158
    %1510 = vmatpush1.bf16.msra.mxu0 %v1157
    %1511 = vmatprep.subr.bf16.mxu0 %v1155
    %1512 = vmatpush1.bf16.msra.mxu0 %v1154
    %1513 = vmatprep.subr.bf16.mxu0 %v1152
    %1514 = vmatpush1.bf16.msra.mxu0 %v1151
    %1515 = vmatprep.subr.bf16.mxu0 %v1149
    %1516 = vmatpush1.bf16.msra.mxu0 %v1148
    %1517 = vmatprep.subr.bf16.mxu0 %v1146
    %1518 = vmatpush1.bf16.msra.mxu0 %v1145
    %1519 = vmatprep.subr.bf16.mxu0 %v1143
    %1520 = vmatpush1.bf16.msra.mxu0 %v1142
    %1521 = vmatprep.subr.bf16.mxu0 %v1188
    %1522 = vmatpush2.bf16.msra.mxu0 %v1187
    %1523 = vmatprep.subr.bf16.mxu0 %v1185
    %1524 = vmatpush2.bf16.msra.mxu0 %v1184
    %1525 = vmatprep.subr.bf16.mxu0 %v1182
    %1526 = vmatpush2.bf16.msra.mxu0 %v1181
    %1527 = vmatprep.subr.bf16.mxu0 %v1179
    %1528 = vmatpush2.bf16.msra.mxu0 %v1178
    %1529 = vmatprep.subr.bf16.mxu0 %v1176
    %1530 = vmatpush2.bf16.msra.mxu0 %v1175
    %1531 = vmatprep.subr.bf16.mxu0 %v1173
    %1532 = vmatpush2.bf16.msra.mxu0 %v1172
    %1533 = vmatprep.subr.bf16.mxu0 %v1170
    %1534 = vmatpush2.bf16.msra.mxu0 %v1169
    %1535 = vmatprep.subr.bf16.mxu0 %v1167
    %1536 = vmatpush2.bf16.msra.mxu0 %v1166
    %1537 = vmatprep.mubr.bf16.mxu0 %v101
    %1538 = vmatmul.mubr.bf16.gmra.mxu0 %v100
    %v1539 = vpop.f32.mrf.mxu0
    %v1540 = vadd.f32 %v1499, %v1539
    %v1541 = vpop.f32.mrf.mxu0
    %v1542 = vadd.f32 %v1501, %v1541
    %v1543 = vpop.f32.mrf.mxu0
    %v1544 = vpop.f32.mrf.mxu0
    %1545 = vdwg.mxu0
    %1546 = vmatprep.subr.bf16.mxu0 0
    %1547 = vmatpush1.bf16.msra.mxu0 %v1021
    %1548 = vmatprep.subr.bf16.mxu0 0
    %1549 = vmatpush1.bf16.msra.mxu0 %v1018
    %1550 = vmatprep.subr.bf16.mxu0 0
    %1551 = vmatpush1.bf16.msra.mxu0 %v1015
    %1552 = vmatprep.subr.bf16.mxu0 0
    %1553 = vmatpush1.bf16.msra.mxu0 %v1012
    %1554 = vmatprep.subr.bf16.mxu0 0
    %1555 = vmatpush1.bf16.msra.mxu0 %v1009
    %1556 = vmatprep.subr.bf16.mxu0 0
    %1557 = vmatpush1.bf16.msra.mxu0 %v1006
    %1558 = vmatprep.subr.bf16.mxu0 0
    %1559 = vmatpush1.bf16.msra.mxu0 %v1003
    %1560 = vmatprep.subr.bf16.mxu0 0
    %1561 = vmatpush1.bf16.msra.mxu0 %v1000
    %1562 = vmatprep.subr.bf16.mxu0 0
    %1563 = vmatpush2.bf16.msra.mxu0 %v1045
    %1564 = vmatprep.subr.bf16.mxu0 0
    %1565 = vmatpush2.bf16.msra.mxu0 %v1042
    %1566 = vmatprep.subr.bf16.mxu0 0
    %1567 = vmatpush2.bf16.msra.mxu0 %v1039
    %1568 = vmatprep.subr.bf16.mxu0 0
    %1569 = vmatpush2.bf16.msra.mxu0 %v1036
    %1570 = vmatprep.subr.bf16.mxu0 0
    %1571 = vmatpush2.bf16.msra.mxu0 %v1033
    %1572 = vmatprep.subr.bf16.mxu0 0
    %1573 = vmatpush2.bf16.msra.mxu0 %v1030
    %1574 = vmatprep.subr.bf16.mxu0 0
    %1575 = vmatpush2.bf16.msra.mxu0 %v1027
    %1576 = vmatprep.subr.bf16.mxu0 0
    %1577 = vmatpush2.bf16.msra.mxu0 %v1024
    %1578 = vmatprep.mubr.bf16.mxu0 %v95
    %1579 = vmatmul.mubr.bf16.gmra.mxu0 %v94
    %v1580 = vpop.f32.mrf.mxu0
    %v1581 = vadd.f32 0.0, %v1580
    %v1582 = vpop.f32.mrf.mxu0
    %v1583 = vpop.f32.mrf.mxu0
    %v1584 = vpop.f32.mrf.mxu0
    %1585 = vdwg.mxu0
    %1586 = vmatprep.subr.bf16.mxu0 0
    %1587 = vmatpush1.bf16.msra.mxu0 %v1069
    %1588 = vmatprep.subr.bf16.mxu0 0
    %1589 = vmatpush1.bf16.msra.mxu0 %v1066
    %1590 = vmatprep.subr.bf16.mxu0 0
    %1591 = vmatpush1.bf16.msra.mxu0 %v1063
    %1592 = vmatprep.subr.bf16.mxu0 0
    %1593 = vmatpush1.bf16.msra.mxu0 %v1060
    %1594 = vmatprep.subr.bf16.mxu0 0
    %1595 = vmatpush1.bf16.msra.mxu0 %v1057
    %1596 = vmatprep.subr.bf16.mxu0 0
    %1597 = vmatpush1.bf16.msra.mxu0 %v1054
    %1598 = vmatprep.subr.bf16.mxu0 0
    %1599 = vmatpush1.bf16.msra.mxu0 %v1051
    %1600 = vmatprep.subr.bf16.mxu0 0
    %1601 = vmatpush1.bf16.msra.mxu0 %v1048
    %1602 = vmatprep.subr.bf16.mxu0 0
    %1603 = vmatpush2.bf16.msra.mxu0 %v1093
    %1604 = vmatprep.subr.bf16.mxu0 0
    %1605 = vmatpush2.bf16.msra.mxu0 %v1090
    %1606 = vmatprep.subr.bf16.mxu0 0
    %1607 = vmatpush2.bf16.msra.mxu0 %v1087
    %1608 = vmatprep.subr.bf16.mxu0 0
    %1609 = vmatpush2.bf16.msra.mxu0 %v1084
    %1610 = vmatprep.subr.bf16.mxu0 0
    %1611 = vmatpush2.bf16.msra.mxu0 %v1081
    %1612 = vmatprep.subr.bf16.mxu0 0
    %1613 = vmatpush2.bf16.msra.mxu0 %v1078
    %1614 = vmatprep.subr.bf16.mxu0 0
    %1615 = vmatpush2.bf16.msra.mxu0 %v1075
    %1616 = vmatprep.subr.bf16.mxu0 0
    %1617 = vmatpush2.bf16.msra.mxu0 %v1072
    %1618 = vmatprep.mubr.bf16.mxu0 %v97
    %1619 = vmatmul.mubr.bf16.gmra.mxu0 %v96
    %v1620 = vpop.f32.mrf.mxu0
    %v1621 = vadd.f32 %v1581, %v1620
    %v1622 = vpop.f32.mrf.mxu0
    %v1623 = vpop.f32.mrf.mxu0
    %v1624 = vpop.f32.mrf.mxu0
    %1625 = vdwg.mxu0
    %1626 = vmatprep.subr.bf16.mxu0 0
    %1627 = vmatpush1.bf16.msra.mxu0 %v1117
    %1628 = vmatprep.subr.bf16.mxu0 0
    %1629 = vmatpush1.bf16.msra.mxu0 %v1114
    %1630 = vmatprep.subr.bf16.mxu0 0
    %1631 = vmatpush1.bf16.msra.mxu0 %v1111
    %1632 = vmatprep.subr.bf16.mxu0 0
    %1633 = vmatpush1.bf16.msra.mxu0 %v1108
    %1634 = vmatprep.subr.bf16.mxu0 0
    %1635 = vmatpush1.bf16.msra.mxu0 %v1105
    %1636 = vmatprep.subr.bf16.mxu0 0
    %1637 = vmatpush1.bf16.msra.mxu0 %v1102
    %1638 = vmatprep.subr.bf16.mxu0 0
    %1639 = vmatpush1.bf16.msra.mxu0 %v1099
    %1640 = vmatprep.subr.bf16.mxu0 0
    %1641 = vmatpush1.bf16.msra.mxu0 %v1096
    %1642 = vmatprep.subr.bf16.mxu0 0
    %1643 = vmatpush2.bf16.msra.mxu0 %v1141
    %1644 = vmatprep.subr.bf16.mxu0 0
    %1645 = vmatpush2.bf16.msra.mxu0 %v1138
    %1646 = vmatprep.subr.bf16.mxu0 0
    %1647 = vmatpush2.bf16.msra.mxu0 %v1135
    %1648 = vmatprep.subr.bf16.mxu0 0
    %1649 = vmatpush2.bf16.msra.mxu0 %v1132
    %1650 = vmatprep.subr.bf16.mxu0 0
    %1651 = vmatpush2.bf16.msra.mxu0 %v1129
    %1652 = vmatprep.subr.bf16.mxu0 0
    %1653 = vmatpush2.bf16.msra.mxu0 %v1126
    %1654 = vmatprep.subr.bf16.mxu0 0
    %1655 = vmatpush2.bf16.msra.mxu0 %v1123
    %1656 = vmatprep.subr.bf16.mxu0 0
    %1657 = vmatpush2.bf16.msra.mxu0 %v1120
    %1658 = vmatprep.mubr.bf16.mxu0 %v99
    %1659 = vmatmul.mubr.bf16.gmra.mxu0 %v98
    %v1660 = vpop.f32.mrf.mxu0
    %v1661 = vadd.f32 %v1621, %v1660
    %v1662 = vpop.f32.mrf.mxu0
    %v1663 = vpop.f32.mrf.mxu0
    %v1664 = vpop.f32.mrf.mxu0
    %1665 = vdwg.mxu0
    %1666 = vmatprep.subr.bf16.mxu0 0
    %1667 = vmatpush1.bf16.msra.mxu0 %v1165
    %1668 = vmatprep.subr.bf16.mxu0 0
    %1669 = vmatpush1.bf16.msra.mxu0 %v1162
    %1670 = vmatprep.subr.bf16.mxu0 0
    %1671 = vmatpush1.bf16.msra.mxu0 %v1159
    %1672 = vmatprep.subr.bf16.mxu0 0
    %1673 = vmatpush1.bf16.msra.mxu0 %v1156
    %1674 = vmatprep.subr.bf16.mxu0 0
    %1675 = vmatpush1.bf16.msra.mxu0 %v1153
    %1676 = vmatprep.subr.bf16.mxu0 0
    %1677 = vmatpush1.bf16.msra.mxu0 %v1150
    %1678 = vmatprep.subr.bf16.mxu0 0
    %1679 = vmatpush1.bf16.msra.mxu0 %v1147
    %1680 = vmatprep.subr.bf16.mxu0 0
    %1681 = vmatpush1.bf16.msra.mxu0 %v1144
    %1682 = vmatprep.subr.bf16.mxu0 0
    %1683 = vmatpush2.bf16.msra.mxu0 %v1189
    %1684 = vmatprep.subr.bf16.mxu0 0
    %1685 = vmatpush2.bf16.msra.mxu0 %v1186
    %1686 = vmatprep.subr.bf16.mxu0 0
    %1687 = vmatpush2.bf16.msra.mxu0 %v1183
    %1688 = vmatprep.subr.bf16.mxu0 0
    %1689 = vmatpush2.bf16.msra.mxu0 %v1180
    %1690 = vmatprep.subr.bf16.mxu0 0
    %1691 = vmatpush2.bf16.msra.mxu0 %v1177
    %1692 = vmatprep.subr.bf16.mxu0 0
    %1693 = vmatpush2.bf16.msra.mxu0 %v1174
    %1694 = vmatprep.subr.bf16.mxu0 0
    %1695 = vmatpush2.bf16.msra.mxu0 %v1171
    %1696 = vmatprep.subr.bf16.mxu0 0
    %1697 = vmatpush2.bf16.msra.mxu0 %v1168
    %1698 = vmatprep.mubr.bf16.mxu0 %v101
    %1699 = vmatmul.mubr.bf16.gmra.mxu0 %v100
    %v1700 = vpop.f32.mrf.mxu0
    %v1701 = vadd.f32 %v1661, %v1700
    %v1702 = vpop.f32.mrf.mxu0
    %v1703 = vpop.f32.mrf.mxu0
    %v1704 = vpop.f32.mrf.mxu0
    %1705 = vdwg.mxu0
    %v1706 = vld [vmem:[%s2] sm:$0xf]
    %v1707 = vld [vmem:[%s3] sm:$0xf]
    %v1708 = vld [vmem:[%s3 + $0x4] sm:$0xf]
    %v1709 = vld [vmem:[%s3 + $0x8] sm:$0xf]
    %v1710 = vld [vmem:[%s3 + $0xc] sm:$0xf]
    %v1711 = vld [vmem:[%s3 + $0x10] sm:$0xf]
    %v1712 = vld [vmem:[%s3 + $0x14] sm:$0xf]
    %v1713 = vld [vmem:[%s3 + $0x18] sm:$0xf]
    %v1714 = vld [vmem:[%s3 + $0x1c] sm:$0xf]
    %v1715 = vld [vmem:[%s3 + $0x20] sm:$0xf]
    %v1716 = vld [vmem:[%s3 + $0x24] sm:$0xf]
    %v1717 = vld [vmem:[%s3 + $0x28] sm:$0xf]
    %v1718 = vld [vmem:[%s3 + $0x2c] sm:$0xf]
    %v1719 = vld [vmem:[%s3 + $0x30] sm:$0xf]
    %v1720 = vld [vmem:[%s3 + $0x34] sm:$0xf]
    %v1721 = vld [vmem:[%s3 + $0x38] sm:$0xf]
    %v1722 = vld [vmem:[%s3 + $0x3c] sm:$0xf]
    %v1723 = vld [vmem:[%s4] sm:$0x1]
    %v1724 = vld [vmem:[%s5] sm:$0xf]
    %v1725 = vld [vmem:[%s5 + $0x4] sm:$0xf]
    %v1726 = vld [vmem:[%s5 + $0x8] sm:$0xf]
    %v1727 = vld [vmem:[%s5 + $0xc] sm:$0xf]
    %v1728 = vld [vmem:[%s5 + $0x10] sm:$0xf]
    %v1729 = vld [vmem:[%s5 + $0x14] sm:$0xf]
    %v1730 = vld [vmem:[%s5 + $0x18] sm:$0xf]
    %v1731 = vld [vmem:[%s5 + $0x1c] sm:$0xf]
    %v1732 = vld [vmem:[%s5 + $0x20] sm:$0xf]
    %v1733 = vld [vmem:[%s5 + $0x24] sm:$0xf]
    %v1734 = vld [vmem:[%s5 + $0x28] sm:$0xf]
    %v1735 = vld [vmem:[%s5 + $0x2c] sm:$0xf]
    %v1736 = vld [vmem:[%s5 + $0x30] sm:$0xf]
    %v1737 = vld [vmem:[%s5 + $0x34] sm:$0xf]
    %v1738 = vld [vmem:[%s5 + $0x38] sm:$0xf]
    %v1739 = vld [vmem:[%s5 + $0x3c] sm:$0xf]
    %v1740 = vld [vmem:[%s6] sm:$0x1]
    %v1741 = vld [vmem:[%s7] sm:$0xf]
    %v1742 = vld [vmem:[%s7 + $0x4] sm:$0xf]
    %v1743 = vld [vmem:[%s7 + $0x8] sm:$0xf]
    %v1744 = vld [vmem:[%s7 + $0xc] sm:$0xf]
    %v1745 = vld [vmem:[%s7 + $0x10] sm:$0xf]
    %v1746 = vld [vmem:[%s7 + $0x14] sm:$0xf]
    %v1747 = vld [vmem:[%s7 + $0x18] sm:$0xf]
    %v1748 = vld [vmem:[%s7 + $0x1c] sm:$0xf]
    %v1749 = vld [vmem:[%s7 + $0x20] sm:$0xf]
    %v1750 = vld [vmem:[%s7 + $0x24] sm:$0xf]
    %v1751 = vld [vmem:[%s7 + $0x28] sm:$0xf]
    %v1752 = vld [vmem:[%s7 + $0x2c] sm:$0xf]
    %v1753 = vld [vmem:[%s7 + $0x30] sm:$0xf]
    %v1754 = vld [vmem:[%s7 + $0x34] sm:$0xf]
    %v1755 = vld [vmem:[%s7 + $0x38] sm:$0xf]
    %v1756 = vld [vmem:[%s7 + $0x3c] sm:$0xf]
    %v1757 = vld [vmem:[%s8] sm:$0xf]
    %v1758 = vld [vmem:[%s8 + $0x4] sm:$0xf]
    %v1759 = vld [vmem:[%s8 + $0x8] sm:$0xf]
    %v1760 = vld [vmem:[%s8 + $0xc] sm:$0xf]
    %1762 = vset.pattern.permute.xlu0 0
    %1763 = vperm.xlu0 %1762, %v1701
    %v1764 = vpop.permute.xlu0 %1763
    %v1766 = vlaneseq
    %v1767 = vshrl.u32 %v1766, 7
    %v1768 = vsub.s32 0, %v1767
    %v1769 = vrot.slane %v1706, %v1768
    %v1770 = vmul.f32 %v1764, %v1769
    %v1771 = vadd.f32 %v1540, %v1770
    %v1772 = vlaneseq
    %v1773 = vshrl.u32 %v1772, 7
    %v1774 = vsub.s32 2, %v1773
    %v1775 = vrot.slane %v1706, %v1774
    %v1776 = vadd.f32 %v1771, %v1775
    %v1777 = vmax.f32 %v1776, 0.0
    %v1778 = vpack.c.bf16 %v1777, %v1777
    %1779 = vset.pattern.permute.xlu0 1
    %1780 = vperm.xlu0 %1779, %v1701
    %v1781 = vpop.permute.xlu0 %1780
    %v1783 = vlaneseq
    %v1784 = vshrl.u32 %v1783, 7
    %v1785 = vsub.s32 1, %v1784
    %v1786 = vrot.slane %v1706, %v1785
    %v1787 = vmul.f32 %v1781, %v1786
    %v1788 = vadd.f32 %v1542, %v1787
    %v1789 = vlaneseq
    %v1790 = vshrl.u32 %v1789, 7
    %v1791 = vsub.s32 3, %v1790
    %v1792 = vrot.slane %v1706, %v1791
    %v1793 = vadd.f32 %v1788, %v1792
    %v1794 = vmax.f32 %v1793, 0.0
    %v1795 = vpack.c.bf16 %v1794, %v1794
    %v1797 = vlaneseq
    %v1798 = vshrl.u32 %v1797, 7
    %v1799 = vsub.s32 0, %v1798
    %v1800 = vrot.slane %v1723, %v1799
    %v1818 = vunpack.c.l.b16 %v1707
    %v1819 = vunpack.c.l.b16 %v1708
    %v1820 = vunpack.c.l.b16 %v1709
    %v1821 = vunpack.c.l.b16 %v1710
    %v1822 = vunpack.c.l.b16 %v1711
    %v1823 = vunpack.c.l.b16 %v1712
    %v1824 = vunpack.c.l.b16 %v1713
    %v1825 = vunpack.c.l.b16 %v1714
    %v1826 = vunpack.c.l.b16 %v1715
    %v1827 = vunpack.c.l.b16 %v1716
    %v1828 = vunpack.c.l.b16 %v1717
    %v1829 = vunpack.c.l.b16 %v1718
    %v1830 = vunpack.c.l.b16 %v1719
    %v1831 = vunpack.c.l.b16 %v1720
    %v1832 = vunpack.c.l.b16 %v1721
    %v1833 = vunpack.c.l.b16 %v1722
    %v1834 = vpack.c.b16 %v1819, %v1818
    %v1835 = vpack.c.b16 %v1821, %v1820
    %v1836 = vpack.c.b16 %v1823, %v1822
    %v1837 = vpack.c.b16 %v1825, %v1824
    %v1838 = vpack.c.b16 %v1827, %v1826
    %v1839 = vpack.c.b16 %v1829, %v1828
    %v1840 = vpack.c.b16 %v1831, %v1830
    %v1841 = vpack.c.b16 %v1833, %v1832
    %1850 = vmatprep.subr.bf16.mxu0 0
    %1851 = vmatpush1.bf16.msra.mxu0 %v1841
    %1852 = vmatprep.subr.bf16.mxu0 0
    %1853 = vmatpush1.bf16.msra.mxu0 %v1840
    %1854 = vmatprep.subr.bf16.mxu0 0
    %1855 = vmatpush1.bf16.msra.mxu0 %v1839
    %1856 = vmatprep.subr.bf16.mxu0 0
    %1857 = vmatpush1.bf16.msra.mxu0 %v1838
    %1858 = vmatprep.subr.bf16.mxu0 0
    %1859 = vmatpush1.bf16.msra.mxu0 %v1837
    %1860 = vmatprep.subr.bf16.mxu0 0
    %1861 = vmatpush1.bf16.msra.mxu0 %v1836
    %1862 = vmatprep.subr.bf16.mxu0 0
    %1863 = vmatpush1.bf16.msra.mxu0 %v1835
    %1864 = vmatprep.subr.bf16.mxu0 0
    %1865 = vmatpush1.bf16.msra.mxu0 %v1834
    %1866 = vmatprep.subr.bf16.mxu0 0
    %1867 = vmatpush2.bf16.msra.mxu0 0
    %1868 = vmatprep.subr.bf16.mxu0 0
    %1869 = vmatpush2.bf16.msra.mxu0 0
    %1870 = vmatprep.subr.bf16.mxu0 0
    %1871 = vmatpush2.bf16.msra.mxu0 0
    %1872 = vmatprep.subr.bf16.mxu0 0
    %1873 = vmatpush2.bf16.msra.mxu0 0
    %1874 = vmatprep.subr.bf16.mxu0 0
    %1875 = vmatpush2.bf16.msra.mxu0 0
    %1876 = vmatprep.subr.bf16.mxu0 0
    %1877 = vmatpush2.bf16.msra.mxu0 0
    %1878 = vmatprep.subr.bf16.mxu0 0
    %1879 = vmatpush2.bf16.msra.mxu0 0
    %1880 = vmatprep.subr.bf16.mxu0 0
    %1881 = vmatpush2.bf16.msra.mxu0 0
    %1882 = vmatprep.mubr.bf16.mxu0 0
    %1883 = vmatmul.mubr.bf16.gmra.mxu0 %v1778
    %v1884 = vpop.f32.mrf.mxu0
    %v1885 = vadd.f32 %v1800, %v1884
    %v1886 = vpop.f32.mrf.mxu0
    %v1887 = vpop.f32.mrf.mxu0
    %v1888 = vpop.f32.mrf.mxu0
    %1889 = vdwg.mxu0
    %v1891 = vlaneseq
    %v1892 = vshrl.u32 %v1891, 7
    %v1893 = vsub.s32 0, %v1892
    %v1894 = vrot.slane %v1740, %v1893
    %v1912 = vunpack.c.l.b16 %v1724
    %v1913 = vunpack.c.l.b16 %v1725
    %v1914 = vunpack.c.l.b16 %v1726
    %v1915 = vunpack.c.l.b16 %v1727
    %v1916 = vunpack.c.l.b16 %v1728
    %v1917 = vunpack.c.l.b16 %v1729
    %v1918 = vunpack.c.l.b16 %v1730
    %v1919 = vunpack.c.l.b16 %v1731
    %v1920 = vunpack.c.l.b16 %v1732
    %v1921 = vunpack.c.l.b16 %v1733
    %v1922 = vunpack.c.l.b16 %v1734
    %v1923 = vunpack.c.l.b16 %v1735
    %v1924 = vunpack.c.l.b16 %v1736
    %v1925 = vunpack.c.l.b16 %v1737
    %v1926 = vunpack.c.l.b16 %v1738
    %v1927 = vunpack.c.l.b16 %v1739
    %v1928 = vpack.c.b16 %v1913, %v1912
    %v1929 = vpack.c.b16 %v1915, %v1914
    %v1930 = vpack.c.b16 %v1917, %v1916
    %v1931 = vpack.c.b16 %v1919, %v1918
    %v1932 = vpack.c.b16 %v1921, %v1920
    %v1933 = vpack.c.b16 %v1923, %v1922
    %v1934 = vpack.c.b16 %v1925, %v1924
    %v1935 = vpack.c.b16 %v1927, %v1926
    %1944 = vmatprep.subr.bf16.mxu0 0
    %1945 = vmatpush1.bf16.msra.mxu0 %v1935
    %1946 = vmatprep.subr.bf16.mxu0 0
    %1947 = vmatpush1.bf16.msra.mxu0 %v1934
    %1948 = vmatprep.subr.bf16.mxu0 0
    %1949 = vmatpush1.bf16.msra.mxu0 %v1933
    %1950 = vmatprep.subr.bf16.mxu0 0
    %1951 = vmatpush1.bf16.msra.mxu0 %v1932
    %1952 = vmatprep.subr.bf16.mxu0 0
    %1953 = vmatpush1.bf16.msra.mxu0 %v1931
    %1954 = vmatprep.subr.bf16.mxu0 0
    %1955 = vmatpush1.bf16.msra.mxu0 %v1930
    %1956 = vmatprep.subr.bf16.mxu0 0
    %1957 = vmatpush1.bf16.msra.mxu0 %v1929
    %1958 = vmatprep.subr.bf16.mxu0 0
    %1959 = vmatpush1.bf16.msra.mxu0 %v1928
    %1960 = vmatprep.subr.bf16.mxu0 0
    %1961 = vmatpush2.bf16.msra.mxu0 0
    %1962 = vmatprep.subr.bf16.mxu0 0
    %1963 = vmatpush2.bf16.msra.mxu0 0
    %1964 = vmatprep.subr.bf16.mxu0 0
    %1965 = vmatpush2.bf16.msra.mxu0 0
    %1966 = vmatprep.subr.bf16.mxu0 0
    %1967 = vmatpush2.bf16.msra.mxu0 0
    %1968 = vmatprep.subr.bf16.mxu0 0
    %1969 = vmatpush2.bf16.msra.mxu0 0
    %1970 = vmatprep.subr.bf16.mxu0 0
    %1971 = vmatpush2.bf16.msra.mxu0 0
    %1972 = vmatprep.subr.bf16.mxu0 0
    %1973 = vmatpush2.bf16.msra.mxu0 0
    %1974 = vmatprep.subr.bf16.mxu0 0
    %1975 = vmatpush2.bf16.msra.mxu0 0
    %1976 = vmatprep.mubr.bf16.mxu0 0
    %1977 = vmatmul.mubr.bf16.gmra.mxu0 %v1795
    %v1978 = vpop.f32.mrf.mxu0
    %v1979 = vadd.f32 %v1894, %v1978
    %v1980 = vpop.f32.mrf.mxu0
    %v1981 = vpop.f32.mrf.mxu0
    %v1982 = vpop.f32.mrf.mxu0
    %1983 = vdwg.mxu0
    %v1984 = vpack.c.bf16 %v1885, %v1885
    %v2001 = vunpack.c.l.b16 %v1741
    %v2002 = vunpack.c.l.b16 %v1742
    %v2003 = vunpack.c.l.b16 %v1743
    %v2004 = vunpack.c.l.b16 %v1744
    %v2005 = vunpack.c.l.b16 %v1745
    %v2006 = vunpack.c.l.b16 %v1746
    %v2007 = vunpack.c.l.b16 %v1747
    %v2008 = vunpack.c.l.b16 %v1748
    %v2009 = vunpack.c.l.b16 %v1749
    %v2010 = vunpack.c.l.b16 %v1750
    %v2011 = vunpack.c.l.b16 %v1751
    %v2012 = vunpack.c.l.b16 %v1752
    %v2013 = vunpack.c.l.b16 %v1753
    %v2014 = vunpack.c.l.b16 %v1754
    %v2015 = vunpack.c.l.b16 %v1755
    %v2016 = vunpack.c.l.b16 %v1756
    %v2017 = vpack.c.b16 %v2002, %v2001
    %v2018 = vpack.c.b16 %v2004, %v2003
    %v2019 = vpack.c.b16 %v2006, %v2005
    %v2020 = vpack.c.b16 %v2008, %v2007
    %v2021 = vpack.c.b16 %v2010, %v2009
    %v2022 = vpack.c.b16 %v2012, %v2011
    %v2023 = vpack.c.b16 %v2014, %v2013
    %v2024 = vpack.c.b16 %v2016, %v2015
    %2033 = vmatprep.subr.bf16.mxu0 0
    %2034 = vmatpush1.bf16.msra.mxu0 %v2024
    %2035 = vmatprep.subr.bf16.mxu0 0
    %2036 = vmatpush1.bf16.msra.mxu0 %v2023
    %2037 = vmatprep.subr.bf16.mxu0 0
    %2038 = vmatpush1.bf16.msra.mxu0 %v2022
    %2039 = vmatprep.subr.bf16.mxu0 0
    %2040 = vmatpush1.bf16.msra.mxu0 %v2021
    %2041 = vmatprep.subr.bf16.mxu0 0
    %2042 = vmatpush1.bf16.msra.mxu0 %v2020
    %2043 = vmatprep.subr.bf16.mxu0 0
    %2044 = vmatpush1.bf16.msra.mxu0 %v2019
    %2045 = vmatprep.subr.bf16.mxu0 0
    %2046 = vmatpush1.bf16.msra.mxu0 %v2018
    %2047 = vmatprep.subr.bf16.mxu0 0
    %2048 = vmatpush1.bf16.msra.mxu0 %v2017
    %2049 = vmatprep.subr.bf16.mxu0 0
    %2050 = vmatpush2.bf16.msra.mxu0 0
    %2051 = vmatprep.subr.bf16.mxu0 0
    %2052 = vmatpush2.bf16.msra.mxu0 0
    %2053 = vmatprep.subr.bf16.mxu0 0
    %2054 = vmatpush2.bf16.msra.mxu0 0
    %2055 = vmatprep.subr.bf16.mxu0 0
    %2056 = vmatpush2.bf16.msra.mxu0 0
    %2057 = vmatprep.subr.bf16.mxu0 0
    %2058 = vmatpush2.bf16.msra.mxu0 0
    %2059 = vmatprep.subr.bf16.mxu0 0
    %2060 = vmatpush2.bf16.msra.mxu0 0
    %2061 = vmatprep.subr.bf16.mxu0 0
    %2062 = vmatpush2.bf16.msra.mxu0 0
    %2063 = vmatprep.subr.bf16.mxu0 0
    %2064 = vmatpush2.bf16.msra.mxu0 0
    %2065 = vmatprep.mubr.bf16.mxu0 0
    %2066 = vmatmul.mubr.bf16.gmra.mxu0 %v1984
    %v2067 = vpop.f32.mrf.mxu0
    %v2068 = vadd.f32 0.0, %v2067
    %v2069 = vpop.f32.mrf.mxu0
    %v2070 = vpop.f32.mrf.mxu0
    %v2071 = vpop.f32.mrf.mxu0
    %2072 = vdwg.mxu0
    %v2073 = vmul.f32 %v2068, 0.25
    %v2074 = vsub.f32 %v1979, %v2073
    %v2075 = vpack.c.bf16 %v2074, %v2074
    %v2080 = vunpack.c.l.b16 %v1757
    %v2081 = vunpack.c.l.b16 %v1758
    %v2082 = vunpack.c.l.b16 %v1759
    %v2083 = vunpack.c.l.b16 %v1760
    %v2084 = vpack.c.b16 %v2081, %v2080
    %v2085 = vpack.c.b16 %v2083, %v2082
    %vm2088 = vcmask 261120
    %v2090 = vsel %vm2088, %v2075, 0
    %2092 = vmatprep.subr.bf16.mxu0 0
    %2093 = vmatpush1.bf16.msra.mxu0 0
    %2094 = vmatprep.subr.bf16.mxu0 0
    %2095 = vmatpush1.bf16.msra.mxu0 0
    %2096 = vmatprep.subr.bf16.mxu0 0
    %2097 = vmatpush1.bf16.msra.mxu0 0
    %2098 = vmatprep.subr.bf16.mxu0 0
    %2099 = vmatpush1.bf16.msra.mxu0 0
    %2100 = vmatprep.subr.bf16.mxu0 0
    %2101 = vmatpush1.bf16.msra.mxu0 0
    %2102 = vmatprep.subr.bf16.mxu0 0
    %2103 = vmatpush1.bf16.msra.mxu0 0
    %2104 = vmatprep.subr.bf16.mxu0 0
    %2105 = vmatpush1.bf16.msra.mxu0 %v2085
    %2106 = vmatprep.subr.bf16.mxu0 0
    %2107 = vmatpush1.bf16.msra.mxu0 %v2084
    %2108 = vmatprep.subr.bf16.mxu0 0
    %2109 = vmatpush2.bf16.msra.mxu0 0
    %2110 = vmatprep.subr.bf16.mxu0 0
    %2111 = vmatpush2.bf16.msra.mxu0 0
    %2112 = vmatprep.subr.bf16.mxu0 0
    %2113 = vmatpush2.bf16.msra.mxu0 0
    %2114 = vmatprep.subr.bf16.mxu0 0
    %2115 = vmatpush2.bf16.msra.mxu0 0
    %2116 = vmatprep.subr.bf16.mxu0 0
    %2117 = vmatpush2.bf16.msra.mxu0 0
    %2118 = vmatprep.subr.bf16.mxu0 0
    %2119 = vmatpush2.bf16.msra.mxu0 0
    %2120 = vmatprep.subr.bf16.mxu0 0
    %2121 = vmatpush2.bf16.msra.mxu0 0
    %2122 = vmatprep.subr.bf16.mxu0 0
    %2123 = vmatpush2.bf16.msra.mxu0 0
    %2124 = vmatprep.mubr.bf16.mxu0 0
    %2125 = vmatmul.mubr.bf16.gmra.mxu0 %v2090
    %v2126 = vpop.f32.mrf.mxu0
    %v2127 = vadd.f32 0.0, %v2126
    %v2128 = vpop.f32.mrf.mxu0
    %v2129 = vpop.f32.mrf.mxu0
    %v2130 = vpop.f32.mrf.mxu0
    %2131 = vdwg.mxu0
    %v2132 = vadd.f32 %v1885, %v2127
    %2133 = vst [vmem:[#allocation5] sm:$0x3] %v2132
    // Predicated region
    $region42: #{tpu_custom_call.1} parent=1 // pred_check
      _
    $region43: #{tpu_custom_call.1} parent=1 // pred_check_branch
      %2135 = sbr.rel (0) target = $region45
    $region44: #{tpu_custom_call.1} parent=1 // pred_region
      %s2137 = ssub.s32 32, 32
      %2138 = vsyncadd [#allocation4], %s2137
      %s2140 = sshll.u32 [#allocation5], 4
      %s2141 = int_to_ptr.vmem [resolvable:$true] %s2140
      %2143 = dma.vmem_to_hbm [thread:$0]  %s2141, 32, %s9, [#allocation4]
    $region45: #{tpu_custom_call.1} parent=1 // pred_fallthru
      _
    // Predicated region
    $region46: #{tpu_custom_call.1} parent=1 // pred_check
      _
    $region47: #{tpu_custom_call.1} parent=1 // pred_check_branch
      %2145 = sbr.rel (0) target = $region49
    $region48: #{tpu_custom_call.1} parent=1 // pred_region
      %2146 = dma.done [#allocation4], 32
    $region49: #{tpu_custom_call.1} parent=1 // pred_fallthru
      _
    %2147 = vsyncpa [#allocation3], 1
    %2148 = vsyncpa [#allocation4], 1

</llo_original>
